<compile_context>
chip_gen: v7x
topology: tpu7x:2x2x1
jax: 0.10.0
libtpu: 0.0.40
codegen_flags: <defaults>
</compile_context>

<pallas_src>
import functools

import jax
import jax.numpy as jnp
from jax import lax
from jax.experimental import pallas as pl
from jax.experimental.pallas import tpu as pltpu


# --------------------------------------------------------------------------
# Kernel
# --------------------------------------------------------------------------

def _conv3x3_unshuffle_kernel(x_ref, xu_ref, xd_ref, w_ref, o_ref, *,
                              t, wp, c_in, c_out):
    """One (batch, row-tile) step of conv3x3(pad=1, no bias) + PixelUnshuffle(2).

    x_ref : (1, t,  wp, 2*c_in)  parity-packed input rows [i*t, i*t + t)
    xu_ref: (1, 1,  wp, 2*c_in)  row i*t - 1   (clamped; zeroed when i == 0)
    xd_ref: (1, 1,  wp, 2*c_in)  row i*t + t   (clamped; zeroed when i == last)
    w_ref : (3, 2*c_in, 4*c_out) per-kh packed weights, lane groups ordered
                                 [rw0_d0 | rw1_d0 | rw0_dm1 | rw1_dp1]
    o_ref : (1, t//2, wp, 4*c_out) output, lane order p*c_out + c, p = rh*2+rw
    """
    i = pl.program_id(1)
    n4 = 4 * c_out

    # One LHS shared by the three kh matmuls (K = 2*c_in, N = 4*c_out each).
    lhs = x_ref[0].reshape(t * wp, 2 * c_in)
    y0 = jnp.dot(lhs, w_ref[0], preferred_element_type=jnp.float32).reshape(t, wp, n4)
    y1 = jnp.dot(lhs, w_ref[1], preferred_element_type=jnp.float32).reshape(t, wp, n4)
    y2 = jnp.dot(lhs, w_ref[2], preferred_element_type=jnp.float32).reshape(t, wp, n4)

    # H halo: 1-row matmuls; zeroed at the grid edges (== the H zero padding).
    up = jnp.dot(xu_ref[0, 0], w_ref[0], preferred_element_type=jnp.float32)
    dn = jnp.dot(xd_ref[0, 0], w_ref[2], preferred_element_type=jnp.float32)
    up = up * (i > 0).astype(jnp.float32)
    dn = dn * (i < pl.num_programs(1) - 1).astype(jnp.float32)

    # Conv output row r = W[kh=1]·x[r] + W[kh=0]·x[r-1] + W[kh=2]·x[r+1].
    # Leading-dim slices/concats only (no lane/sublane relayout).
    acc = (y1
           + jnp.concatenate([up[None], y0[:t - 1]], axis=0)
           + jnp.concatenate([y2[1:], dn[None]], axis=0))          # (t, wp, 4*c_out)

    # W boundary: the dm1/dp1 lane groups act on the neighbouring packed
    # column; shift them by one column with a zero boundary column.
    # (pltpu.roll + mask is an alternative; the slice+concat is on the small
    #  c_out-wide f32 results and is hidden under the DMA on this
    #  memory-bound kernel.)
    base = acc[..., 0:2 * c_out]                                    # [rw0_d0 | rw1_d0]
    g_m1 = acc[..., 2 * c_out:3 * c_out]                            # rw0, col w-1
    g_p1 = acc[..., 3 * c_out:4 * c_out]                            # rw1, col w+1
    zcol = jnp.zeros((t, 1, c_out), jnp.float32)
    s_r = jnp.concatenate([zcol, g_m1[:, :wp - 1, :]], axis=1)      # col w <- w-1
    s_l = jnp.concatenate([g_p1[:, 1:, :], zcol], axis=1)           # col w <- w+1
    conv = base + jnp.concatenate([s_r, s_l], axis=-1)              # (t, wp, 2*c_out)

    # Fused PixelUnshuffle(2): out[ho] lanes = [conv row 2ho | conv row 2ho+1].
    conv = conv.reshape(t // 2, 2, wp, 2 * c_out)
    out = jnp.concatenate([conv[:, 0], conv[:, 1]], axis=-1)        # (t/2, wp, 4*c_out)
    o_ref[0] = out.astype(o_ref.dtype)


# --------------------------------------------------------------------------
# Weight packing / tiling heuristics
# --------------------------------------------------------------------------

def _pack_weights(conv_weight, dtype):
    """OIHW (c_out, c_in, 3, 3) -> (3, 2*c_in, 4*c_out) per-kh tap matrices.

    K index    = s*c_in + ci           (s = W-parity slot inside a packed col)
    lane index = g*c_out + co,  groups g: 0:(rw=0,d=0) 1:(rw=1,d=0)
                                          2:(rw=0,d=-1) 3:(rw=1,d=+1)
    where the conv tap used is kw = 2*d + s - rw + 1 (zero outside [0, 2]).
    """
    c_out, c_in = conv_weight.shape[0], conv_weight.shape[1]
    w = jnp.transpose(conv_weight, (2, 3, 1, 0)).astype(dtype)      # (kh, kw, ci, co)
    groups = [(0, 0), (1, 0), (0, -1), (1, 1)]                      # (rw, d)
    wb = jnp.zeros((3, 2, c_in, 4, c_out), dtype=dtype)             # [kh, s, ci, g, co]
    for g, (rw, d) in enumerate(groups):
        for s in range(2):
            kw = 2 * d + s - rw + 1
            if 0 <= kw <= 2:
                wb = wb.at[:, s, :, g, :].set(w[:, kw, :, :])
    return wb.reshape(3, 2 * c_in, 4 * c_out)


def _vmem_caps():
    """Generation-aware (v5e/v6e: 128 MiB, v7x: 64 MiB) VMEM budgets."""
    cap = 64 * 1024 * 1024
    try:
        info = pltpu.get_tpu_info()
        cap = int(getattr(info, "vmem_capacity_bytes", cap))
    except Exception:
        pass
    vmem_limit = min(cap * 3 // 4, 64 * 1024 * 1024)   # 48 MiB on v7x, 64 MiB on v5e/v6e
    tile_budget = min(cap // 4, 24 * 1024 * 1024)      # per-step working set incl. 2x buffers
    return tile_budget, vmem_limit


def _pick_row_tile(N, H, wp, c_in, c_out, in_itemsize, out_itemsize, budget_bytes):
    """Largest even divisor of H whose per-step working set (incl. BlockSpec
    double-buffering and f32 temporaries) fits the budget; keeps >= 2 grid
    steps so both v7x TensorCores get work."""
    def lanes(c): return -(-c // 128) * 128
    def subl(r): return -(-r // 8) * 8

    row_in = subl(wp) * lanes(2 * c_in) * in_itemsize
    row_out = subl(wp) * lanes(4 * c_out) * out_itemsize
    row_f32 = subl(wp) * lanes(4 * c_out) * 4
    fixed = (4 * row_in                                              # 2 halo blocks x2 buffers
             + 2 * 3 * subl(2 * c_in) * lanes(4 * c_out) * in_itemsize)  # weights x2

    def step_bytes(t):
        return (fixed
                + 2 * t * row_in                  # main input block, double-buffered
                + 2 * (t // 2) * row_out          # output block, double-buffered
                + t * row_in                      # flattened LHS
                + 6 * t * row_f32)                # y0/y1/y2/acc/conv/out temporaries

    divisors = [d for d in range(2, H + 1, 2) if H % d == 0]
    fitting = [d for d in divisors if step_bytes(d) <= budget_bytes]
    t = max(fitting) if fitting else 2
    if N * (H // t) < 2:                          # v7x: 2 TCs need >= 2 parallel steps
        alt = [d for d in (fitting or divisors) if N * (H // d) >= 2]
        if alt:
            t = max(alt)
    return t


# --------------------------------------------------------------------------
# Wrappers
# --------------------------------------------------------------------------

def downsample_nhwc(x_nhwc, conv_weight, *, compute_dtype=None, out_dtype=None,
                    row_tile=None):
    """Fused conv3x3(pad=1, bias=False) + PixelUnshuffle(2) on NHWC input.

    x_nhwc     : (N, H, W, c_in)
    conv_weight: (c_out, c_in, 3, 3)  PyTorch OIHW,  c_out = c_in // 2
    returns    : (N, H/2, W/2, 4*c_out) with lane order p*c_out + c,
                 p = rh*2 + rw (fold the permutation to PyTorch's c*4 + p into
                 the consumer's weights if the model stays NHWC).
    """
    N, H, W, c_in = x_nhwc.shape
    c_out = conv_weight.shape[0]
    assert conv_weight.shape == (c_out, c_in, 3, 3), conv_weight.shape
    assert H % 2 == 0 and W % 2 == 0, "PixelUnshuffle(2) needs even H and W"

    if compute_dtype is None:
        compute_dtype = x_nhwc.dtype
        if compute_dtype not in (jnp.float32, jnp.bfloat16):
            compute_dtype = jnp.float32
    if out_dtype is None:
        out_dtype = compute_dtype

    wp = W // 2
    xw = x_nhwc.astype(compute_dtype).reshape(N, H, wp, 2 * c_in)   # free reshape
    wb = _pack_weights(conv_weight, compute_dtype)                   # (3, 2*c_in, 4*c_out)

    tile_budget, vmem_limit = _vmem_caps()
    if row_tile is None:
        row_tile = _pick_row_tile(N, H, wp, c_in, c_out,
                                  jnp.dtype(compute_dtype).itemsize,
                                  jnp.dtype(out_dtype).itemsize, tile_budget)
    t = row_tile
    assert H % t == 0 and t % 2 == 0, t

    kernel = functools.partial(_conv3x3_unshuffle_kernel,
                               t=t, wp=wp, c_in=c_in, c_out=c_out)

    return pl.pallas_call(
        kernel,
        out_shape=jax.ShapeDtypeStruct((N, H // 2, wp, 4 * c_out), out_dtype),
        grid_spec=pltpu.PrefetchScalarGridSpec(
            num_scalar_prefetch=0,
            grid=(N, H // t),
            in_specs=[
                # main rows [i*t, i*t + t)
                pl.BlockSpec((1, t, wp, 2 * c_in), lambda n, i: (n, i, 0, 0)),
                # 1-row top halo (clamped; zeroed in-kernel at i == 0)
                pl.BlockSpec((1, 1, wp, 2 * c_in),
                             lambda n, i: (n, jnp.maximum(i * t - 1, 0), 0, 0)),
                # 1-row bottom halo (clamped; zeroed in-kernel at i == last)
                pl.BlockSpec((1, 1, wp, 2 * c_in),
                             lambda n, i: (n, jnp.minimum(i * t + t, H - 1), 0, 0)),
                # packed weights, resident across the grid
                pl.BlockSpec((3, 2 * c_in, 4 * c_out), lambda n, i: (0, 0, 0)),
            ],
            out_specs=pl.BlockSpec((1, t // 2, wp, 4 * c_out),
                                   lambda n, i: (n, i, 0, 0)),
        ),
        compiler_params=pltpu.CompilerParams(
            dimension_semantics=("parallel", "parallel"),
            vmem_limit_bytes=vmem_limit),
    )(xw, xw, xw, wb)


def downsample_forward(x_nchw, conv_weight, *, compute_dtype=None, out_dtype=None,
                       row_tile=None):
    """Downsample forward, PyTorch-compatible NCHW in / NCHW out.

    x_nchw     : (N, n_feat, H, W)
    conv_weight: (n_feat//2, n_feat, 3, 3)
    returns    : (N, 2*n_feat, H//2, W//2)

    The only non-kernel passes are the NCHW<->NHWC boundary transposes (the
    channel permutation is folded into the single output transpose).
    """
    # TODO(synk): in an NHWC-resident model call downsample_nhwc() directly and
    # drop both boundary transposes (fold the channel permute into the consumer).
    N, c_in, H, W = x_nchw.shape
    c_out = conv_weight.shape[0]

    x_nhwc = jnp.transpose(x_nchw, (0, 2, 3, 1))
    out_nhwc = downsample_nhwc(x_nhwc, conv_weight, compute_dtype=compute_dtype,
                               out_dtype=out_dtype, row_tile=row_tile)

    # kernel lane order p*c_out + c  ->  PyTorch channel order c*4 + p,
    # folded into the single NHWC->NCHW transpose.
    out = out_nhwc.reshape(N, H // 2, W // 2, 4, c_out)
    out = jnp.transpose(out, (0, 4, 3, 1, 2))
    return out.reshape(N, 4 * c_out, H // 2, W // 2)


# --------------------------------------------------------------------------
# Reference + self-test
# --------------------------------------------------------------------------

def _pixel_unshuffle_nchw(y, r=2):
    N, C, H, W = y.shape
    y = y.reshape(N, C, H // r, r, W // r, r)
    y = y.transpose(0, 1, 3, 5, 2, 4)
    return y.reshape(N, C * r * r, H // r, W // r)


def _reference(x_nchw, conv_weight):
    y = lax.conv_general_dilated(
        x_nchw.astype(jnp.float32), conv_weight.astype(jnp.float32),
        window_strides=(1, 1), padding=((1, 1), (1, 1)),
        dimension_numbers=("NCHW", "OIHW", "NCHW"),
        precision=lax.Precision.HIGHEST)
    return _pixel_unshuffle_nchw(y, r=2)


if __name__ == "__main__":
    key = jax.random.PRNGKey(0)
    k_x, k_w = jax.random.split(key)

    N, n_feat, H, W = 2, 4, 16, 16
    x = jax.random.normal(k_x, (N, n_feat, H, W), dtype=jnp.float32)
    # Conv2d(n_feat, n_feat//2, 3, bias=False) weight: (n_feat//2, n_feat, 3, 3)
    w = jax.random.normal(k_w, (n_feat // 2, n_feat, 3, 3), dtype=jnp.float32) * 0.1

    ref = jax.block_until_ready(_reference(x, w))

    # f32 path (matches PyTorch numerics); auto row_tile (single tile here).
    out = jax.block_until_ready(downsample_forward(x, w))
    assert out.shape == (N, 2 * n_feat, H // 2, W // 2), out.shape
    assert jnp.allclose(out, ref, atol=1e-3, rtol=1e-3), "f32 mismatch vs reference"

    # Multi-tile path: exercises the clamped H-halo BlockSpecs + edge zeroing.
    out_tiled = jax.block_until_ready(downsample_forward(x, w, row_tile=4))
    assert jnp.allclose(out_tiled, ref, atol=1e-3, rtol=1e-3), "tiled mismatch"

    # bf16 end-to-end (bf16 operands + bf16 output, f32 accumulation).
    out_bf16 = jax.block_until_ready(
        downsample_forward(x, w, compute_dtype=jnp.bfloat16))
    assert out_bf16.dtype == jnp.bfloat16
    assert jnp.allclose(out_bf16.astype(jnp.float32), ref,
                        atol=6e-2, rtol=6e-2), "bf16 mismatch"

    print("KERNEL_OK")
</pallas_src>

<mosaic_0001>
module attributes {stable_mosaic.version = 11 : i64} {
  func.func @_conv3x3_unshuffle_kernel(%arg0: i32, %arg1: i32, %arg2: memref<1x16x8x8xf32, #tpu.memory_space<vmem>>, %arg3: memref<1x1x8x8xf32, #tpu.memory_space<vmem>>, %arg4: memref<1x1x8x8xf32, #tpu.memory_space<vmem>>, %arg5: memref<3x8x8xf32, #tpu.memory_space<vmem>>, %arg6: memref<1x8x8x8xf32, #tpu.memory_space<vmem>>) attributes {dimension_semantics = [#tpu.dimension_semantics<parallel>, #tpu.dimension_semantics<parallel>], iteration_bounds = array<i64: 2, 1>, scalar_prefetch = 0 : i64, scratch_operands = 0 : i64, tpu.core_type = #tpu.core_type<tc>, window_params = [{transform_indices = @transform_0, window_bounds = array<i64: 1, 16, 8, 8>}, {transform_indices = @transform_1, window_bounds = array<i64: 1, 1, 8, 8>}, {transform_indices = @transform_2, window_bounds = array<i64: 1, 1, 8, 8>}, {pipeline_mode = #tpu.pipeline_mode<synchronous>, transform_indices = @transform_3, window_bounds = array<i64: 3, 8, 8>}, {transform_indices = @transform_4, window_bounds = array<i64: 1, 8, 8, 8>}]} {
    %c0 = arith.constant 0 : index
    %c0_0 = arith.constant 0 : index
    %c0_1 = arith.constant 0 : index
    %c0_2 = arith.constant 0 : index
    %0 = vector.load %arg2[%c0, %c0_0, %c0_1, %c0_2] : memref<1x16x8x8xf32, #tpu.memory_space<vmem>>, vector<1x16x8x8xf32>
    %1 = vector.shape_cast %0 : vector<1x16x8x8xf32> to vector<16x8x8xf32>
    %2 = vector.shape_cast %1 : vector<16x8x8xf32> to vector<128x8xf32>
    %c0_3 = arith.constant 0 : index
    %c0_4 = arith.constant 0 : index
    %c0_5 = arith.constant 0 : index
    %3 = vector.load %arg5[%c0_3, %c0_4, %c0_5] : memref<3x8x8xf32, #tpu.memory_space<vmem>>, vector<1x8x8xf32>
    %4 = vector.shape_cast %3 : vector<1x8x8xf32> to vector<8x8xf32>
    %cst = arith.constant dense<0.000000e+00> : vector<128x8xf32>
    %5 = tpu.matmul %2, %4, %cst {dimension_numbers = #tpu.dot_dimension_numbers<[1], [0], [0], [1], [0, 0, 1, 1], [], []>} : vector<128x8xf32>, vector<8x8xf32>, vector<128x8xf32> -> vector<128x8xf32>
    %6 = vector.shape_cast %5 : vector<128x8xf32> to vector<16x8x8xf32>
    %c1 = arith.constant 1 : index
    %c0_6 = arith.constant 0 : index
    %c0_7 = arith.constant 0 : index
    %7 = vector.load %arg5[%c1, %c0_6, %c0_7] : memref<3x8x8xf32, #tpu.memory_space<vmem>>, vector<1x8x8xf32>
    %8 = vector.shape_cast %7 : vector<1x8x8xf32> to vector<8x8xf32>
    %cst_8 = arith.constant dense<0.000000e+00> : vector<128x8xf32>
    %9 = tpu.matmul %2, %8, %cst_8 {dimension_numbers = #tpu.dot_dimension_numbers<[1], [0], [0], [1], [0, 0, 1, 1], [], []>} : vector<128x8xf32>, vector<8x8xf32>, vector<128x8xf32> -> vector<128x8xf32>
    %10 = vector.shape_cast %9 : vector<128x8xf32> to vector<16x8x8xf32>
    %c2 = arith.constant 2 : index
    %c0_9 = arith.constant 0 : index
    %c0_10 = arith.constant 0 : index
    %11 = vector.load %arg5[%c2, %c0_9, %c0_10] : memref<3x8x8xf32, #tpu.memory_space<vmem>>, vector<1x8x8xf32>
    %12 = vector.shape_cast %11 : vector<1x8x8xf32> to vector<8x8xf32>
    %cst_11 = arith.constant dense<0.000000e+00> : vector<128x8xf32>
    %13 = tpu.matmul %2, %12, %cst_11 {dimension_numbers = #tpu.dot_dimension_numbers<[1], [0], [0], [1], [0, 0, 1, 1], [], []>} : vector<128x8xf32>, vector<8x8xf32>, vector<128x8xf32> -> vector<128x8xf32>
    %14 = vector.shape_cast %13 : vector<128x8xf32> to vector<16x8x8xf32>
    %c0_12 = arith.constant 0 : index
    %c0_13 = arith.constant 0 : index
    %c0_14 = arith.constant 0 : index
    %c0_15 = arith.constant 0 : index
    %15 = vector.load %arg3[%c0_12, %c0_13, %c0_14, %c0_15] : memref<1x1x8x8xf32, #tpu.memory_space<vmem>>, vector<1x1x8x8xf32>
    %16 = vector.shape_cast %15 : vector<1x1x8x8xf32> to vector<8x8xf32>
    %c0_16 = arith.constant 0 : index
    %c0_17 = arith.constant 0 : index
    %c0_18 = arith.constant 0 : index
    %17 = vector.load %arg5[%c0_16, %c0_17, %c0_18] : memref<3x8x8xf32, #tpu.memory_space<vmem>>, vector<1x8x8xf32>
    %18 = vector.shape_cast %17 : vector<1x8x8xf32> to vector<8x8xf32>
    %cst_19 = arith.constant dense<0.000000e+00> : vector<8x8xf32>
    %19 = tpu.matmul %16, %18, %cst_19 {dimension_numbers = #tpu.dot_dimension_numbers<[1], [0], [0], [1], [0, 0, 1, 1], [], []>} : vector<8x8xf32>, vector<8x8xf32>, vector<8x8xf32> -> vector<8x8xf32>
    %c0_20 = arith.constant 0 : index
    %c0_21 = arith.constant 0 : index
    %c0_22 = arith.constant 0 : index
    %c0_23 = arith.constant 0 : index
    %20 = vector.load %arg4[%c0_20, %c0_21, %c0_22, %c0_23] : memref<1x1x8x8xf32, #tpu.memory_space<vmem>>, vector<1x1x8x8xf32>
    %21 = vector.shape_cast %20 : vector<1x1x8x8xf32> to vector<8x8xf32>
    %c2_24 = arith.constant 2 : index
    %c0_25 = arith.constant 0 : index
    %c0_26 = arith.constant 0 : index
    %22 = vector.load %arg5[%c2_24, %c0_25, %c0_26] : memref<3x8x8xf32, #tpu.memory_space<vmem>>, vector<1x8x8xf32>
    %23 = vector.shape_cast %22 : vector<1x8x8xf32> to vector<8x8xf32>
    %cst_27 = arith.constant dense<0.000000e+00> : vector<8x8xf32>
    %24 = tpu.matmul %21, %23, %cst_27 {dimension_numbers = #tpu.dot_dimension_numbers<[1], [0], [0], [1], [0, 0, 1, 1], [], []>} : vector<8x8xf32>, vector<8x8xf32>, vector<8x8xf32> -> vector<8x8xf32>
    %c0_i32 = arith.constant 0 : i32
    %25 = arith.cmpi sgt, %arg1, %c0_i32 : i32
    %26 = arith.extui %25 : i1 to i32
    %27 = arith.sitofp %26 : i32 to f32
    %28 = vector.broadcast %27 : f32 to vector<8x8xf32>
    %29 = arith.mulf %19, %28 : vector<8x8xf32>
    %c0_i32_28 = arith.constant 0 : i32
    %30 = arith.cmpi slt, %arg1, %c0_i32_28 : i32
    %31 = arith.extui %30 : i1 to i32
    %32 = arith.sitofp %31 : i32 to f32
    %33 = vector.broadcast %32 : f32 to vector<8x8xf32>
    %34 = arith.mulf %24, %33 : vector<8x8xf32>
    %35 = vector.shape_cast %29 : vector<8x8xf32> to vector<1x8x8xf32>
    %36 = vector.extract_strided_slice %6 {offsets = [0, 0, 0], sizes = [15, 8, 8], strides = [1, 1, 1]} : vector<16x8x8xf32> to vector<15x8x8xf32>
    %37 = tpu.concatenate %35, %36 in 0 : vector<1x8x8xf32>, vector<15x8x8xf32> -> vector<16x8x8xf32>
    %38 = arith.addf %10, %37 : vector<16x8x8xf32>
    %39 = vector.extract_strided_slice %14 {offsets = [1, 0, 0], sizes = [15, 8, 8], strides = [1, 1, 1]} : vector<16x8x8xf32> to vector<15x8x8xf32>
    %40 = vector.shape_cast %34 : vector<8x8xf32> to vector<1x8x8xf32>
    %41 = tpu.concatenate %39, %40 in 0 : vector<15x8x8xf32>, vector<1x8x8xf32> -> vector<16x8x8xf32>
    %42 = arith.addf %38, %41 : vector<16x8x8xf32>
    %43 = vector.extract_strided_slice %42 {offsets = [0, 0, 0], sizes = [16, 8, 4], strides = [1, 1, 1]} : vector<16x8x8xf32> to vector<16x8x4xf32>
    %44 = vector.extract_strided_slice %42 {offsets = [0, 0, 4], sizes = [16, 8, 2], strides = [1, 1, 1]} : vector<16x8x8xf32> to vector<16x8x2xf32>
    %45 = vector.extract_strided_slice %42 {offsets = [0, 0, 6], sizes = [16, 8, 2], strides = [1, 1, 1]} : vector<16x8x8xf32> to vector<16x8x2xf32>
    %cst_29 = arith.constant 0.000000e+00 : f32
    %46 = vector.broadcast %cst_29 : f32 to vector<16x1x2xf32>
    %47 = vector.extract_strided_slice %44 {offsets = [0, 0, 0], sizes = [16, 7, 2], strides = [1, 1, 1]} : vector<16x8x2xf32> to vector<16x7x2xf32>
    %48 = tpu.concatenate %46, %47 in 1 : vector<16x1x2xf32>, vector<16x7x2xf32> -> vector<16x8x2xf32>
    %49 = vector.extract_strided_slice %45 {offsets = [0, 1, 0], sizes = [16, 7, 2], strides = [1, 1, 1]} : vector<16x8x2xf32> to vector<16x7x2xf32>
    %50 = tpu.concatenate %49, %46 in 1 : vector<16x7x2xf32>, vector<16x1x2xf32> -> vector<16x8x2xf32>
    %51 = tpu.concatenate %48, %50 in 2 : vector<16x8x2xf32>, vector<16x8x2xf32> -> vector<16x8x4xf32>
    %52 = arith.addf %43, %51 : vector<16x8x4xf32>
    %53 = vector.shape_cast %52 : vector<16x8x4xf32> to vector<8x2x8x4xf32>
    %54 = vector.extract_strided_slice %53 {offsets = [0, 0, 0, 0], sizes = [8, 1, 8, 4], strides = [1, 1, 1, 1]} : vector<8x2x8x4xf32> to vector<8x1x8x4xf32>
    %55 = vector.shape_cast %54 : vector<8x1x8x4xf32> to vector<8x8x4xf32>
    %56 = vector.extract_strided_slice %53 {offsets = [0, 1, 0, 0], sizes = [8, 1, 8, 4], strides = [1, 1, 1, 1]} : vector<8x2x8x4xf32> to vector<8x1x8x4xf32>
    %57 = vector.shape_cast %56 : vector<8x1x8x4xf32> to vector<8x8x4xf32>
    %58 = tpu.concatenate %55, %57 in 2 : vector<8x8x4xf32>, vector<8x8x4xf32> -> vector<8x8x8xf32>
    %c0_30 = arith.constant 0 : index
    %c0_31 = arith.constant 0 : index
    %c0_32 = arith.constant 0 : index
    %c0_33 = arith.constant 0 : index
    %59 = vector.load %arg6[%c0_30, %c0_31, %c0_32, %c0_33] : memref<1x8x8x8xf32, #tpu.memory_space<vmem>>, vector<1x8x8x8xf32>
    %60 = vector.shape_cast %59 : vector<1x8x8x8xf32> to vector<8x8x8xf32>
    %61 = vector.shape_cast %58 : vector<8x8x8xf32> to vector<1x8x8x8xf32>
    tpu.vector_store %arg6[%c0_30, %c0_31, %c0_32, %c0_33], %61 {strides = array<i32>} : memref<1x8x8x8xf32, #tpu.memory_space<vmem>>, vector<1x8x8x8xf32>,
    return
  }
  func.func @transform_0(%arg0: i32, %arg1: i32) -> (i32, i32, i32, i32) {
    %c0_i32 = arith.constant 0 : i32
    %c0_i32_0 = arith.constant 0 : i32
    %c0_i32_1 = arith.constant 0 : i32
    return %arg0, %arg1, %c0_i32, %c0_i32_0 : i32, i32, i32, i32
  }
  func.func @transform_1(%arg0: i32, %arg1: i32) -> (i32, i32, i32, i32) {
    %c16_i32 = arith.constant 16 : i32
    %0 = arith.muli %arg1, %c16_i32 : i32
    %c1_i32 = arith.constant 1 : i32
    %1 = arith.subi %0, %c1_i32 : i32
    %c0_i32 = arith.constant 0 : i32
    %2 = arith.maxsi %1, %c0_i32 : i32
    %c0_i32_0 = arith.constant 0 : i32
    %c0_i32_1 = arith.constant 0 : i32
    %c0_i32_2 = arith.constant 0 : i32
    return %arg0, %2, %c0_i32_0, %c0_i32_1 : i32, i32, i32, i32
  }
  func.func @transform_2(%arg0: i32, %arg1: i32) -> (i32, i32, i32, i32) {
    %c16_i32 = arith.constant 16 : i32
    %0 = arith.muli %arg1, %c16_i32 : i32
    %c16_i32_0 = arith.constant 16 : i32
    %1 = arith.addi %0, %c16_i32_0 : i32
    %c15_i32 = arith.constant 15 : i32
    %2 = arith.minsi %1, %c15_i32 : i32
    %c0_i32 = arith.constant 0 : i32
    %c0_i32_1 = arith.constant 0 : i32
    %c0_i32_2 = arith.constant 0 : i32
    return %arg0, %2, %c0_i32, %c0_i32_1 : i32, i32, i32, i32
  }
  func.func @transform_3(%arg0: i32, %arg1: i32) -> (i32, i32, i32) {
    %c0_i32 = arith.constant 0 : i32
    %c0_i32_0 = arith.constant 0 : i32
    %c0_i32_1 = arith.constant 0 : i32
    %c0_i32_2 = arith.constant 0 : i32
    return %c0_i32, %c0_i32_0, %c0_i32_1 : i32, i32, i32
  }
  func.func @transform_4(%arg0: i32, %arg1: i32) -> (i32, i32, i32, i32) {
    %c0_i32 = arith.constant 0 : i32
    %c0_i32_0 = arith.constant 0 : i32
    %c0_i32_1 = arith.constant 0 : i32
    return %arg0, %arg1, %c0_i32, %c0_i32_0 : i32, i32, i32, i32
  }
}

</mosaic_0001>

<llo_original>
// kernel: tpu_custom_call.1
$region0: #{tpu_custom_call.1}
  #allocation0 [shape = 'u32[]', space=smem, size = 0x4, offset = 0x4, fixed_abs, tag = 'smem constant byte address 0x4 - core index']
  #allocation1 [shape = 'u32[144,128]{1,0:T(1,128)}', space=vmem, size = 0x12000, scoped, tag = 'internal scratch']
  %s0 = inlined_call_operand.vmem [shape: f32[2,16,8,8], index: 0, kind: input, shape index: {}]
  %s1 = inlined_call_operand.vmem [shape: f32[2,16,8,8], index: 1, kind: input, shape index: {}]
  %s2 = inlined_call_operand.vmem [shape: f32[2,16,8,8], index: 2, kind: input, shape index: {}]
  %s3 = inlined_call_operand.vmem [shape: f32[3,8,8], index: 3, kind: input, shape index: {}]
  %s4 = inlined_call_operand.hbm [shape: f32[2,8,8,8], index: 4, kind: output, shape index: {}]
  %s5 = sld [smem:[#allocation0]]
  $region49: #{tpu_custom_call.1} parent=0
    _
  %s7 = ssub.s32 1, %s5
  %s8 = scalar_select 0, %s7, %s5
  $region1: #{tpu_custom_call.1} parent=0
    #allocation2 [shape = 'u8[65536]{0}', space=vmem, size = 0x10000, scoped, tag = 'output window, operand 0']
    #allocation3 [shape = 's32[2]{0}', space=sflag, size = 0x8, scoped, tag = 'scoped memory for tpu_custom_call.1']
    %9 = vsyncpa [#allocation3], 0
    %s10 = scalar_lea.sflag [#allocation3], 1
    %11 = vsyncpa %s10, 0
    loop: start=0, step=1, limit=4
    $region2: #{tpu_custom_call.1} parent=1 // loop_pre_header
      _
    $region3: #{tpu_custom_call.1} parent=1 // loop_header
      %s13 = sphi 0, %s17
      %p14 = scmp.ge.s32.totalorder %s13, 4
      %s20 = sphi 0, %s32
      %s21 = sphi 0, %s28
      %s22 = sphi 0, %s20
      %s23 = sphi 0, %s21
      %s24 = sphi 0, %s22
      %s25 = sphi 0, %s23
      %s37 = sphi 0, %s39
      %s40 = sphi 0, %s37
      %s41 = sphi 0, %s40
      %s57 = sphi 0, %s41
      %s73 = sphi 0, %s75
      %s76 = sphi 0, %s73
      %s77 = sphi 0, %s76
      %s93 = sphi 0, %s77
      %s109 = sphi 0, %s111
      %s112 = sphi 0, %s109
      %s113 = sphi 0, %s112
      %s129 = sphi 0, %s113
      %s133 = sphi 0, %s133
      %s135 = sphi 0, %s133
      %s136 = sphi 0, %s135
      %s150 = sphi 0, %s136
      %s158 = sphi 0, %s160
      %s161 = sphi 0, %s158
      %s162 = sphi 0, %s161
      %s178 = sphi 0, %s162
    $region4: #{tpu_custom_call.1} parent=1 // loop_header_branch
      %16 = sbr.rel (%p14) target = $region8
    $region5: #{tpu_custom_call.1} parent=1 // loop_body
      %s18 = ssub.s32 %s13, 1
      %s19 = ssub.s32 %s13, 2
      %s26 = sadd.s32 1, %s21
      %p27 = scmp.ge.s32.totalorder %s26, 1
      %s28 = scalar_select %p27, 0, %s26
      %s29 = sadd.s32 1, %s20
      %s30 = scalar_select %p27, %s29, %s20
      %p31 = scmp.ge.s32.totalorder %s30, 2
      %s32 = scalar_select %p31, 0, %s30
      %s33 = ssub.s32 %s20, %s32
      %s34 = ssub.s32 %s21, %s28
      %s35 = sor.u32 %s33, %s34
      %p36 = scmp.eq.s32.totalorder %s35, 0
      %s38 = sadd.s32 %s37, 1
      %s39 = scalar_select %p36, %s37, %s38
      %p42 = pneg %p36
      %p43 = scmp.eq.s32.totalorder %s13, 1
      %p44 = por %p42, %p43
      %p45 = scmp.ne.s32.totalorder %s37, %s40
      %p46 = scmp.eq.s32.totalorder %s13, 0
      %p47 = por %p45, %p46
      %p48 = scmp.ne.s32.totalorder %s37, %s40
      %p49 = scmp.eq.s32.totalorder %s18, 1
      %p50 = por %p48, %p49
      %p51 = scmp.ne.s32.totalorder %s40, %s41
      %p52 = scmp.eq.s32.totalorder %s18, 0
      %p53 = por %p51, %p52
      %p54 = scmp.ne.s32.totalorder %s40, %s41
      %p55 = scmp.eq.s32.totalorder %s19, 1
      %p56 = por %p54, %p55
      %p58 = scmp.ne.s32.totalorder %s41, %s57
      %p59 = scmp.eq.s32.totalorder %s19, 0
      %p60 = por %p58, %p59
      %s61 = smul.u32 %s21, 16
      %s62 = ssub.s32 %s61, 1
      %p63 = scmp.gt.s32.totalorder %s62, 0
      %s64 = scalar_select %p63, %s62, 0
      %s65 = smul.u32 %s28, 16
      %s66 = ssub.s32 %s65, 1
      %p67 = scmp.gt.s32.totalorder %s66, 0
      %s68 = scalar_select %p67, %s66, 0
      %s69 = ssub.s32 %s20, %s32
      %s70 = ssub.s32 %s64, %s68
      %s71 = sor.u32 %s69, %s70
      %p72 = scmp.eq.s32.totalorder %s71, 0
      %s74 = sadd.s32 %s73, 1
      %s75 = scalar_select %p72, %s73, %s74
      %p78 = pneg %p72
      %p79 = scmp.eq.s32.totalorder %s13, 1
      %p80 = por %p78, %p79
      %p81 = scmp.ne.s32.totalorder %s73, %s76
      %p82 = scmp.eq.s32.totalorder %s13, 0
      %p83 = por %p81, %p82
      %p84 = scmp.ne.s32.totalorder %s73, %s76
      %p85 = scmp.eq.s32.totalorder %s18, 1
      %p86 = por %p84, %p85
      %p87 = scmp.ne.s32.totalorder %s76, %s77
      %p88 = scmp.eq.s32.totalorder %s18, 0
      %p89 = por %p87, %p88
      %p90 = scmp.ne.s32.totalorder %s76, %s77
      %p91 = scmp.eq.s32.totalorder %s19, 1
      %p92 = por %p90, %p91
      %p94 = scmp.ne.s32.totalorder %s77, %s93
      %p95 = scmp.eq.s32.totalorder %s19, 0
      %p96 = por %p94, %p95
      %s97 = smul.u32 %s21, 16
      %s98 = sadd.s32 %s97, 16
      %p99 = scmp.lt.s32.totalorder %s98, 15
      %s100 = scalar_select %p99, %s98, 15
      %s101 = smul.u32 %s28, 16
      %s102 = sadd.s32 %s101, 16
      %p103 = scmp.lt.s32.totalorder %s102, 15
      %s104 = scalar_select %p103, %s102, 15
      %s105 = ssub.s32 %s20, %s32
      %s106 = ssub.s32 %s100, %s104
      %s107 = sor.u32 %s105, %s106
      %p108 = scmp.eq.s32.totalorder %s107, 0
      %s110 = sadd.s32 %s109, 1
      %s111 = scalar_select %p108, %s109, %s110
      %p114 = pneg %p108
      %p115 = scmp.eq.s32.totalorder %s13, 1
      %p116 = por %p114, %p115
      %p117 = scmp.ne.s32.totalorder %s109, %s112
      %p118 = scmp.eq.s32.totalorder %s13, 0
      %p119 = por %p117, %p118
      %p120 = scmp.ne.s32.totalorder %s109, %s112
      %p121 = scmp.eq.s32.totalorder %s18, 1
      %p122 = por %p120, %p121
      %p123 = scmp.ne.s32.totalorder %s112, %s113
      %p124 = scmp.eq.s32.totalorder %s18, 0
      %p125 = por %p123, %p124
      %p126 = scmp.ne.s32.totalorder %s112, %s113
      %p127 = scmp.eq.s32.totalorder %s19, 1
      %p128 = por %p126, %p127
      %p130 = scmp.ne.s32.totalorder %s113, %s129
      %p131 = scmp.eq.s32.totalorder %s19, 0
      %p132 = por %p130, %p131
      %s134 = sadd.s32 %s133, 1
      %p137 = scmp.eq.s32.totalorder %s13, 1
      %p138 = scmp.ne.s32.totalorder %s133, %s135
      %p139 = scmp.eq.s32.totalorder %s13, 0
      %p140 = por %p138, %p139
      %p141 = scmp.ne.s32.totalorder %s133, %s135
      %p142 = scmp.eq.s32.totalorder %s18, 1
      %p143 = por %p141, %p142
      %p144 = scmp.ne.s32.totalorder %s135, %s136
      %p145 = scmp.eq.s32.totalorder %s18, 0
      %p146 = por %p144, %p145
      %p147 = scmp.ne.s32.totalorder %s135, %s136
      %p148 = scmp.eq.s32.totalorder %s19, 1
      %p149 = por %p147, %p148
      %p151 = scmp.ne.s32.totalorder %s136, %s150
      %p152 = scmp.eq.s32.totalorder %s19, 0
      %p153 = por %p151, %p152
      %s154 = ssub.s32 %s20, %s32
      %s155 = ssub.s32 %s21, %s28
      %s156 = sor.u32 %s154, %s155
      %p157 = scmp.eq.s32.totalorder %s156, 0
      %s159 = sadd.s32 %s158, 1
      %s160 = scalar_select %p157, %s158, %s159
      %p163 = pneg %p157
      %p164 = scmp.eq.s32.totalorder %s13, 1
      %p165 = por %p163, %p164
      %p166 = scmp.ne.s32.totalorder %s158, %s161
      %p167 = scmp.eq.s32.totalorder %s13, 0
      %p168 = por %p166, %p167
      %p169 = scmp.ne.s32.totalorder %s158, %s161
      %p170 = scmp.eq.s32.totalorder %s18, 1
      %p171 = por %p169, %p170
      %p172 = scmp.ne.s32.totalorder %s161, %s162
      %p173 = scmp.eq.s32.totalorder %s18, 0
      %p174 = por %p172, %p173
      %p175 = scmp.ne.s32.totalorder %s161, %s162
      %p176 = scmp.eq.s32.totalorder %s19, 1
      %p177 = por %p175, %p176
      %p179 = scmp.ne.s32.totalorder %s162, %s178
      %p180 = scmp.eq.s32.totalorder %s19, 0
      %p181 = por %p179, %p180
      %p182 = scmp.le.s32.totalorder 1, %s13
      %p183 = scmp.lt.s32.totalorder %s13, 3
      %p184 = pnand %p182, %p183
      %p185 = pneg %p184
      // Predicated region
      $region9: #{tpu_custom_call.1} parent=5 // pred_check
        _
      $region10: #{tpu_custom_call.1} parent=5 // pred_check_branch
        %187 = sbr.rel (%p184) target = $region12
      $region11: #{tpu_custom_call.1} parent=5 // pred_region
        %s188 = ssub.s32 %s13, 1
        // Predicated region
        $region13: #{tpu_custom_call.1} parent=11 // pred_check
          %p189 = pneg %p146
        $region14: #{tpu_custom_call.1} parent=11 // pred_check_branch
          %191 = sbr.rel (%p189) target = $region16
        $region15: #{tpu_custom_call.1} parent=11 // pred_region
          _
        $region16: #{tpu_custom_call.1} parent=11 // pred_fallthru
          _
      $region12: #{tpu_custom_call.1} parent=5 // pred_fallthru
        _
      %p192 = scmp.lt.s32.totalorder %s13, 2
      // Predicated region
      $region17: #{tpu_custom_call.1} parent=5 // pred_check
        %p193 = pneg %p192
      $region18: #{tpu_custom_call.1} parent=5 // pred_check_branch
        %195 = sbr.rel (%p193) target = $region20
      $region19: #{tpu_custom_call.1} parent=5 // pred_region
        // Predicated region
        $region21: #{tpu_custom_call.1} parent=19 // pred_check
          %p196 = pneg %p47
        $region22: #{tpu_custom_call.1} parent=19 // pred_check_branch
          %198 = sbr.rel (%p196) target = $region24
        $region23: #{tpu_custom_call.1} parent=19 // pred_region
          %s199 = smul.u32 16, %s21
          %p200 = scmp.lt.s32.totalorder %s20, 1
          %s201 = scalar_select %p200, %s20, 1
          %p202 = scmp.lt.s32.totalorder %s199, 15
          %s203 = scalar_select %p202, %s199, 15
          %s204 = smul.addr %s201, 16
          %s205 = sadd.s32 %s203, %s204
          %s206 = smul.addr %s205, 8
          %s207 = scalar_lea.vmem %s0, %s206
          %s208 = smul.u32 16, %s21
        $region24: #{tpu_custom_call.1} parent=19 // pred_fallthru
          _
        // Predicated region
        $region25: #{tpu_custom_call.1} parent=19 // pred_check
          %p209 = pneg %p83
        $region26: #{tpu_custom_call.1} parent=19 // pred_check_branch
          %211 = sbr.rel (%p209) target = $region28
        $region27: #{tpu_custom_call.1} parent=19 // pred_region
          %s212 = smul.u32 %s21, 16
          %s213 = ssub.s32 %s212, 1
          %p214 = scmp.gt.s32.totalorder %s213, 0
          %s215 = scalar_select %p214, %s213, 0
          %p216 = scmp.lt.s32.totalorder %s20, 1
          %s217 = scalar_select %p216, %s20, 1
          %p218 = scmp.lt.s32.totalorder %s215, 15
          %s219 = scalar_select %p218, %s215, 15
          %s220 = smul.addr %s217, 16
          %s221 = sadd.s32 %s219, %s220
          %s222 = smul.addr %s221, 8
          %s223 = scalar_lea.vmem %s1, %s222
          %s224 = smul.u32 %s21, 16
          %s225 = ssub.s32 %s224, 1
          %p226 = scmp.gt.s32.totalorder %s225, 0
          %s227 = scalar_select %p226, %s225, 0
        $region28: #{tpu_custom_call.1} parent=19 // pred_fallthru
          _
        // Predicated region
        $region29: #{tpu_custom_call.1} parent=19 // pred_check
          %p228 = pneg %p119
        $region30: #{tpu_custom_call.1} parent=19 // pred_check_branch
          %230 = sbr.rel (%p228) target = $region32
        $region31: #{tpu_custom_call.1} parent=19 // pred_region
          %s231 = smul.u32 %s21, 16
          %s232 = sadd.s32 %s231, 16
          %p233 = scmp.lt.s32.totalorder %s232, 15
          %s234 = scalar_select %p233, %s232, 15
          %p235 = scmp.lt.s32.totalorder %s20, 1
          %s236 = scalar_select %p235, %s20, 1
          %p237 = scmp.lt.s32.totalorder %s234, 15
          %s238 = scalar_select %p237, %s234, 15
          %s239 = smul.addr %s236, 16
          %s240 = sadd.s32 %s238, %s239
          %s241 = smul.addr %s240, 8
          %s242 = scalar_lea.vmem %s2, %s241
          %s243 = smul.u32 %s21, 16
          %s244 = sadd.s32 %s243, 16
          %p245 = scmp.lt.s32.totalorder %s244, 15
          %s246 = scalar_select %p245, %s244, 15
        $region32: #{tpu_custom_call.1} parent=19 // pred_fallthru
          _
      $region20: #{tpu_custom_call.1} parent=5 // pred_fallthru
        _
      %p247 = scmp.le.s32.totalorder 1, %s13
      %p248 = scmp.lt.s32.totalorder %s13, 3
      %p249 = pnand %p247, %p248
      %p250 = pneg %p249
      // Predicated region
      $region33: #{tpu_custom_call.1} parent=5 // pred_check
        _
      $region34: #{tpu_custom_call.1} parent=5 // pred_check_branch
        %252 = sbr.rel (%p249) target = $region36
      $region35: #{tpu_custom_call.1} parent=5 // pred_region
        %s253 = ssub.s32 %s13, 1
        %s254 = smul.u32 16, %s23
        %p255 = scmp.lt.s32.totalorder %s22, 1
        %s256 = scalar_select %p255, %s22, 1
        %p257 = scmp.lt.s32.totalorder %s254, 15
        %s258 = scalar_select %p257, %s254, 15
        %s259 = smul.addr %s256, 16
        %s260 = sadd.s32 %s258, %s259
        %s261 = smul.addr %s260, 8
        %s262 = scalar_lea.vmem %s0, %s261
        %p263 = pneg %p53
        %p264 = pneg %p50
        %s265 = smul.u32 %s23, 16
        %s266 = ssub.s32 %s265, 1
        %p267 = scmp.gt.s32.totalorder %s266, 0
        %s268 = scalar_select %p267, %s266, 0
        %p269 = scmp.lt.s32.totalorder %s22, 1
        %s270 = scalar_select %p269, %s22, 1
        %p271 = scmp.lt.s32.totalorder %s268, 15
        %s272 = scalar_select %p271, %s268, 15
        %s273 = smul.addr %s270, 16
        %s274 = sadd.s32 %s272, %s273
        %s275 = smul.addr %s274, 8
        %s276 = scalar_lea.vmem %s1, %s275
        %p277 = pneg %p89
        %p278 = pneg %p86
        %s279 = smul.u32 %s23, 16
        %s280 = sadd.s32 %s279, 16
        %p281 = scmp.lt.s32.totalorder %s280, 15
        %s282 = scalar_select %p281, %s280, 15
        %p283 = scmp.lt.s32.totalorder %s22, 1
        %s284 = scalar_select %p283, %s22, 1
        %p285 = scmp.lt.s32.totalorder %s282, 15
        %s286 = scalar_select %p285, %s282, 15
        %s287 = smul.addr %s284, 16
        %s288 = sadd.s32 %s286, %s287
        %s289 = smul.addr %s288, 8
        %s290 = scalar_lea.vmem %s2, %s289
        %p291 = pneg %p125
        %p292 = pneg %p122
        %p293 = pneg %p146
        %p294 = pneg %p143
        %p295 = pneg %p174
        %p296 = pneg %p171
        %s297 = sand.u32 %s161, 1
        %s298 = scalar_lea.sflag [#allocation3], %s297
        %s299 = sand.u32 %s161, 1
        %s300 = smul.addr %s299, 64
        %s301 = scalar_lea.vmem [#allocation2], %s300
        %s302 = smul.u32 16, %s23
        %p303 = scmp.lt.s32.totalorder %s22, 1
        %s304 = scalar_select %p303, %s22, 1
        %p305 = scmp.lt.s32.totalorder %s302, 15
        %s306 = scalar_select %p305, %s302, 15
        %s307 = smul.addr %s304, 16
        %s308 = sadd.s32 %s306, %s307
        %s309 = smul.addr %s308, 8
        %s310 = scalar_lea.vmem %s0, %s309
        %s311 = smul.u32 16, %s23
        %s312 = smul.u32 %s23, 16
        %s313 = ssub.s32 %s312, 1
        %p314 = scmp.gt.s32.totalorder %s313, 0
        %s315 = scalar_select %p314, %s313, 0
        %p316 = scmp.lt.s32.totalorder %s22, 1
        %s317 = scalar_select %p316, %s22, 1
        %p318 = scmp.lt.s32.totalorder %s315, 15
        %s319 = scalar_select %p318, %s315, 15
        %s320 = smul.addr %s317, 16
        %s321 = sadd.s32 %s319, %s320
        %s322 = smul.addr %s321, 8
        %s323 = scalar_lea.vmem %s1, %s322
        %s324 = smul.u32 %s23, 16
        %s325 = ssub.s32 %s324, 1
        %p326 = scmp.gt.s32.totalorder %s325, 0
        %s327 = scalar_select %p326, %s325, 0
        %s328 = smul.u32 %s23, 16
        %s329 = sadd.s32 %s328, 16
        %p330 = scmp.lt.s32.totalorder %s329, 15
        %s331 = scalar_select %p330, %s329, 15
        %p332 = scmp.lt.s32.totalorder %s22, 1
        %s333 = scalar_select %p332, %s22, 1
        %p334 = scmp.lt.s32.totalorder %s331, 15
        %s335 = scalar_select %p334, %s331, 15
        %s336 = smul.addr %s333, 16
        %s337 = sadd.s32 %s335, %s336
        %s338 = smul.addr %s337, 8
        %s339 = scalar_lea.vmem %s2, %s338
        %s340 = smul.u32 %s23, 16
        %s341 = sadd.s32 %s340, 16
        %p342 = scmp.lt.s32.totalorder %s341, 15
        %s343 = scalar_select %p342, %s341, 15
        %s344 = smul.u32 8, %s23
        %v345 = vld [vmem:[%s310] sm:$0xff]
        %v346 = vld [vmem:[%s310 + $0x8] sm:$0xff]
        %v347 = vld [vmem:[%s310 + $0x10] sm:$0xff]
        %v348 = vld [vmem:[%s310 + $0x18] sm:$0xff]
        %v349 = vld [vmem:[%s310 + $0x20] sm:$0xff]
        %v350 = vld [vmem:[%s310 + $0x28] sm:$0xff]
        %v351 = vld [vmem:[%s310 + $0x30] sm:$0xff]
        %v352 = vld [vmem:[%s310 + $0x38] sm:$0xff]
        %v353 = vld [vmem:[%s310 + $0x40] sm:$0xff]
        %v354 = vld [vmem:[%s310 + $0x48] sm:$0xff]
        %v355 = vld [vmem:[%s310 + $0x50] sm:$0xff]
        %v356 = vld [vmem:[%s310 + $0x58] sm:$0xff]
        %v357 = vld [vmem:[%s310 + $0x60] sm:$0xff]
        %v358 = vld [vmem:[%s310 + $0x68] sm:$0xff]
        %v359 = vld [vmem:[%s310 + $0x70] sm:$0xff]
        %v360 = vld [vmem:[%s310 + $0x78] sm:$0xff]
        %v361 = vld [vmem:[%s3] sm:$0xff]
        %vm362 = vcmask 64512
        %v364 = vsel %vm362, %v345, 0
        %v367 = vsel %vm362, %v346, 0
        %v370 = vsel %vm362, %v347, 0
        %v373 = vsel %vm362, %v348, 0
        %v376 = vsel %vm362, %v349, 0
        %v379 = vsel %vm362, %v350, 0
        %v382 = vsel %vm362, %v351, 0
        %v385 = vsel %vm362, %v352, 0
        %v388 = vsel %vm362, %v353, 0
        %v391 = vsel %vm362, %v354, 0
        %v394 = vsel %vm362, %v355, 0
        %v397 = vsel %vm362, %v356, 0
        %v400 = vsel %vm362, %v357, 0
        %v403 = vsel %vm362, %v358, 0
        %v406 = vsel %vm362, %v359, 0
        %v409 = vsel %vm362, %v360, 0
        %411 = vmatprep.subr.mxu0 0.0
        %412 = vmatpush1.msra.mxu0 %v361
        %413 = vmatprep.subr.mxu0 0.0
        %414 = vmatpush1.msra.mxu0 0.0
        %415 = vmatprep.subr.mxu0 0.0
        %416 = vmatpush1.msra.mxu0 0.0
        %417 = vmatprep.subr.mxu0 0.0
        %418 = vmatpush1.msra.mxu0 0.0
        %419 = vmatprep.subr.mxu0 0.0
        %420 = vmatpush1.msra.mxu0 0.0
        %421 = vmatprep.subr.mxu0 0.0
        %422 = vmatpush1.msra.mxu0 0.0
        %423 = vmatprep.subr.mxu0 0.0
        %424 = vmatpush1.msra.mxu0 0.0
        %425 = vmatprep.subr.mxu0 0.0
        %426 = vmatpush1.msra.mxu0 0.0
        %427 = vmatprep.subr.mxu0 0.0
        %428 = vmatpush1.msra.mxu0 0.0
        %429 = vmatprep.subr.mxu0 0.0
        %430 = vmatpush1.msra.mxu0 0.0
        %431 = vmatprep.subr.mxu0 0.0
        %432 = vmatpush1.msra.mxu0 0.0
        %433 = vmatprep.subr.mxu0 0.0
        %434 = vmatpush1.msra.mxu0 0.0
        %435 = vmatprep.subr.mxu0 0.0
        %436 = vmatpush1.msra.mxu0 0.0
        %437 = vmatprep.subr.mxu0 0.0
        %438 = vmatpush1.msra.mxu0 0.0
        %439 = vmatprep.subr.mxu0 0.0
        %440 = vmatpush1.msra.mxu0 0.0
        %441 = vmatprep.subr.mxu0 0.0
        %442 = vmatpush1.msra.mxu0 0.0
        %443 = vmatprep.subr.mxu0 0.0
        %444 = vmatpush1.msra.mxu0 0.0
        %445 = vmatprep.subr.mxu0 0.0
        %446 = vmatpush1.msra.mxu0 0.0
        %447 = vmatprep.subr.mxu0 0.0
        %448 = vmatpush1.msra.mxu0 0.0
        %449 = vmatprep.subr.mxu0 0.0
        %450 = vmatpush1.msra.mxu0 0.0
        %451 = vmatprep.subr.mxu0 0.0
        %452 = vmatpush1.msra.mxu0 0.0
        %453 = vmatprep.subr.mxu0 0.0
        %454 = vmatpush1.msra.mxu0 0.0
        %455 = vmatprep.subr.mxu0 0.0
        %456 = vmatpush1.msra.mxu0 0.0
        %457 = vmatprep.subr.mxu0 0.0
        %458 = vmatpush1.msra.mxu0 0.0
        %459 = vmatprep.subr.mxu0 0.0
        %460 = vmatpush1.msra.mxu0 0.0
        %461 = vmatprep.subr.mxu0 0.0
        %462 = vmatpush1.msra.mxu0 0.0
        %463 = vmatprep.subr.mxu0 0.0
        %464 = vmatpush1.msra.mxu0 0.0
        %465 = vmatprep.subr.mxu0 0.0
        %466 = vmatpush1.msra.mxu0 0.0
        %467 = vmatprep.subr.mxu0 0.0
        %468 = vmatpush1.msra.mxu0 0.0
        %469 = vmatprep.subr.mxu0 0.0
        %470 = vmatpush1.msra.mxu0 0.0
        %471 = vmatprep.subr.mxu0 0.0
        %472 = vmatpush1.msra.mxu0 0.0
        %473 = vmatprep.subr.mxu0 0.0
        %474 = vmatpush1.msra.mxu0 0.0
        %475 = vmatprep.mubr.f32.mxu0 0.0
        %476 = vmatmul.mubr.f32.gmra.mrb[0].mxu0 %v364
        %v477 = vpop.f32.mrb[0].mxu0
        %v478 = vadd.f32 0.0, %v477
        %v479 = vpop.f32.mrb[0].mxu0
        %480 = vmatprep.mubr.f32.mxu0 0.0
        %481 = vmatmul.mubr.f32.gmra.mrb[0].mxu0 %v367
        %v482 = vpop.f32.mrb[0].mxu0
        %v483 = vadd.f32 0.0, %v482
        %v484 = vpop.f32.mrb[0].mxu0
        %485 = vmatprep.mubr.f32.mxu0 0.0
        %486 = vmatmul.mubr.f32.gmra.mrb[0].mxu0 %v370
        %v487 = vpop.f32.mrb[0].mxu0
        %v488 = vadd.f32 0.0, %v487
        %v489 = vpop.f32.mrb[0].mxu0
        %490 = vmatprep.mubr.f32.mxu0 0.0
        %491 = vmatmul.mubr.f32.gmra.mrb[0].mxu0 %v373
        %v492 = vpop.f32.mrb[0].mxu0
        %v493 = vadd.f32 0.0, %v492
        %v494 = vpop.f32.mrb[0].mxu0
        %495 = vmatprep.mubr.f32.mxu0 0.0
        %496 = vmatmul.mubr.f32.gmra.mrb[0].mxu0 %v376
        %v497 = vpop.f32.mrb[0].mxu0
        %v498 = vadd.f32 0.0, %v497
        %v499 = vpop.f32.mrb[0].mxu0
        %500 = vmatprep.mubr.f32.mxu0 0.0
        %501 = vmatmul.mubr.f32.gmra.mrb[0].mxu0 %v379
        %v502 = vpop.f32.mrb[0].mxu0
        %v503 = vadd.f32 0.0, %v502
        %v504 = vpop.f32.mrb[0].mxu0
        %505 = vmatprep.mubr.f32.mxu0 0.0
        %506 = vmatmul.mubr.f32.gmra.mrb[0].mxu0 %v382
        %v507 = vpop.f32.mrb[0].mxu0
        %v508 = vadd.f32 0.0, %v507
        %v509 = vpop.f32.mrb[0].mxu0
        %510 = vmatprep.mubr.f32.mxu0 0.0
        %511 = vmatmul.mubr.f32.gmra.mrb[0].mxu0 %v385
        %v512 = vpop.f32.mrb[0].mxu0
        %v513 = vadd.f32 0.0, %v512
        %v514 = vpop.f32.mrb[0].mxu0
        %515 = vmatprep.mubr.f32.mxu0 0.0
        %516 = vmatmul.mubr.f32.gmra.mrb[0].mxu0 %v388
        %v517 = vpop.f32.mrb[0].mxu0
        %v518 = vadd.f32 0.0, %v517
        %v519 = vpop.f32.mrb[0].mxu0
        %520 = vmatprep.mubr.f32.mxu0 0.0
        %521 = vmatmul.mubr.f32.gmra.mrb[0].mxu0 %v391
        %v522 = vpop.f32.mrb[0].mxu0
        %v523 = vadd.f32 0.0, %v522
        %v524 = vpop.f32.mrb[0].mxu0
        %525 = vmatprep.mubr.f32.mxu0 0.0
        %526 = vmatmul.mubr.f32.gmra.mrb[0].mxu0 %v394
        %v527 = vpop.f32.mrb[0].mxu0
        %v528 = vadd.f32 0.0, %v527
        %v529 = vpop.f32.mrb[0].mxu0
        %530 = vmatprep.mubr.f32.mxu0 0.0
        %531 = vmatmul.mubr.f32.gmra.mrb[0].mxu0 %v397
        %v532 = vpop.f32.mrb[0].mxu0
        %v533 = vadd.f32 0.0, %v532
        %v534 = vpop.f32.mrb[0].mxu0
        %535 = vmatprep.mubr.f32.mxu0 0.0
        %536 = vmatmul.mubr.f32.gmra.mrb[0].mxu0 %v400
        %v537 = vpop.f32.mrb[0].mxu0
        %v538 = vadd.f32 0.0, %v537
        %v539 = vpop.f32.mrb[0].mxu0
        %540 = vmatprep.mubr.f32.mxu0 0.0
        %541 = vmatmul.mubr.f32.gmra.mrb[0].mxu0 %v403
        %v542 = vpop.f32.mrb[0].mxu0
        %v543 = vadd.f32 0.0, %v542
        %v544 = vpop.f32.mrb[0].mxu0
        %545 = vmatprep.mubr.f32.mxu0 0.0
        %546 = vmatmul.mubr.f32.gmra.mrb[0].mxu0 %v406
        %v547 = vpop.f32.mrb[0].mxu0
        %v548 = vadd.f32 0.0, %v547
        %v549 = vpop.f32.mrb[0].mxu0
        %550 = vmatprep.mubr.f32.mxu0 0.0
        %551 = vmatmul.mubr.f32.gmra.mrb[0].mxu0 %v409
        %v552 = vpop.f32.mrb[0].mxu0
        %v553 = vpop.f32.mrb[0].mxu0
        %554 = vdwg.mxu0
        %s555 = scalar_lea.vmem %s3, 8
        %v556 = vld [vmem:[%s555] sm:$0xff]
        %557 = vmatprep.subr.mxu0 0.0
        %558 = vmatpush1.msra.mxu0 %v556
        %559 = vmatprep.subr.mxu0 0.0
        %560 = vmatpush1.msra.mxu0 0.0
        %561 = vmatprep.subr.mxu0 0.0
        %562 = vmatpush1.msra.mxu0 0.0
        %563 = vmatprep.subr.mxu0 0.0
        %564 = vmatpush1.msra.mxu0 0.0
        %565 = vmatprep.subr.mxu0 0.0
        %566 = vmatpush1.msra.mxu0 0.0
        %567 = vmatprep.subr.mxu0 0.0
        %568 = vmatpush1.msra.mxu0 0.0
        %569 = vmatprep.subr.mxu0 0.0
        %570 = vmatpush1.msra.mxu0 0.0
        %571 = vmatprep.subr.mxu0 0.0
        %572 = vmatpush1.msra.mxu0 0.0
        %573 = vmatprep.subr.mxu0 0.0
        %574 = vmatpush1.msra.mxu0 0.0
        %575 = vmatprep.subr.mxu0 0.0
        %576 = vmatpush1.msra.mxu0 0.0
        %577 = vmatprep.subr.mxu0 0.0
        %578 = vmatpush1.msra.mxu0 0.0
        %579 = vmatprep.subr.mxu0 0.0
        %580 = vmatpush1.msra.mxu0 0.0
        %581 = vmatprep.subr.mxu0 0.0
        %582 = vmatpush1.msra.mxu0 0.0
        %583 = vmatprep.subr.mxu0 0.0
        %584 = vmatpush1.msra.mxu0 0.0
        %585 = vmatprep.subr.mxu0 0.0
        %586 = vmatpush1.msra.mxu0 0.0
        %587 = vmatprep.subr.mxu0 0.0
        %588 = vmatpush1.msra.mxu0 0.0
        %589 = vmatprep.subr.mxu0 0.0
        %590 = vmatpush1.msra.mxu0 0.0
        %591 = vmatprep.subr.mxu0 0.0
        %592 = vmatpush1.msra.mxu0 0.0
        %593 = vmatprep.subr.mxu0 0.0
        %594 = vmatpush1.msra.mxu0 0.0
        %595 = vmatprep.subr.mxu0 0.0
        %596 = vmatpush1.msra.mxu0 0.0
        %597 = vmatprep.subr.mxu0 0.0
        %598 = vmatpush1.msra.mxu0 0.0
        %599 = vmatprep.subr.mxu0 0.0
        %600 = vmatpush1.msra.mxu0 0.0
        %601 = vmatprep.subr.mxu0 0.0
        %602 = vmatpush1.msra.mxu0 0.0
        %603 = vmatprep.subr.mxu0 0.0
        %604 = vmatpush1.msra.mxu0 0.0
        %605 = vmatprep.subr.mxu0 0.0
        %606 = vmatpush1.msra.mxu0 0.0
        %607 = vmatprep.subr.mxu0 0.0
        %608 = vmatpush1.msra.mxu0 0.0
        %609 = vmatprep.subr.mxu0 0.0
        %610 = vmatpush1.msra.mxu0 0.0
        %611 = vmatprep.subr.mxu0 0.0
        %612 = vmatpush1.msra.mxu0 0.0
        %613 = vmatprep.subr.mxu0 0.0
        %614 = vmatpush1.msra.mxu0 0.0
        %615 = vmatprep.subr.mxu0 0.0
        %616 = vmatpush1.msra.mxu0 0.0
        %617 = vmatprep.subr.mxu0 0.0
        %618 = vmatpush1.msra.mxu0 0.0
        %619 = vmatprep.subr.mxu0 0.0
        %620 = vmatpush1.msra.mxu0 0.0
        %621 = vmatprep.mubr.f32.mxu0 0.0
        %622 = vmatmul.mubr.f32.gmra.mrb[0].mxu0 %v364
        %v623 = vpop.f32.mrb[0].mxu0
        %v624 = vadd.f32 0.0, %v623
        %v625 = vpop.f32.mrb[0].mxu0
        %626 = vmatprep.mubr.f32.mxu0 0.0
        %627 = vmatmul.mubr.f32.gmra.mrb[0].mxu0 %v367
        %v628 = vpop.f32.mrb[0].mxu0
        %v629 = vadd.f32 0.0, %v628
        %v630 = vpop.f32.mrb[0].mxu0
        %631 = vmatprep.mubr.f32.mxu0 0.0
        %632 = vmatmul.mubr.f32.gmra.mrb[0].mxu0 %v370
        %v633 = vpop.f32.mrb[0].mxu0
        %v634 = vadd.f32 0.0, %v633
        %v635 = vpop.f32.mrb[0].mxu0
        %636 = vmatprep.mubr.f32.mxu0 0.0
        %637 = vmatmul.mubr.f32.gmra.mrb[0].mxu0 %v373
        %v638 = vpop.f32.mrb[0].mxu0
        %v639 = vadd.f32 0.0, %v638
        %v640 = vpop.f32.mrb[0].mxu0
        %641 = vmatprep.mubr.f32.mxu0 0.0
        %642 = vmatmul.mubr.f32.gmra.mrb[0].mxu0 %v376
        %v643 = vpop.f32.mrb[0].mxu0
        %v644 = vadd.f32 0.0, %v643
        %v645 = vpop.f32.mrb[0].mxu0
        %646 = vmatprep.mubr.f32.mxu0 0.0
        %647 = vmatmul.mubr.f32.gmra.mrb[0].mxu0 %v379
        %v648 = vpop.f32.mrb[0].mxu0
        %v649 = vadd.f32 0.0, %v648
        %v650 = vpop.f32.mrb[0].mxu0
        %651 = vmatprep.mubr.f32.mxu0 0.0
        %652 = vmatmul.mubr.f32.gmra.mrb[0].mxu0 %v382
        %v653 = vpop.f32.mrb[0].mxu0
        %v654 = vadd.f32 0.0, %v653
        %v655 = vpop.f32.mrb[0].mxu0
        %656 = vmatprep.mubr.f32.mxu0 0.0
        %657 = vmatmul.mubr.f32.gmra.mrb[0].mxu0 %v385
        %v658 = vpop.f32.mrb[0].mxu0
        %v659 = vadd.f32 0.0, %v658
        %v660 = vpop.f32.mrb[0].mxu0
        %661 = vmatprep.mubr.f32.mxu0 0.0
        %662 = vmatmul.mubr.f32.gmra.mrb[0].mxu0 %v388
        %v663 = vpop.f32.mrb[0].mxu0
        %v664 = vadd.f32 0.0, %v663
        %v665 = vpop.f32.mrb[0].mxu0
        %666 = vmatprep.mubr.f32.mxu0 0.0
        %667 = vmatmul.mubr.f32.gmra.mrb[0].mxu0 %v391
        %v668 = vpop.f32.mrb[0].mxu0
        %v669 = vadd.f32 0.0, %v668
        %v670 = vpop.f32.mrb[0].mxu0
        %671 = vmatprep.mubr.f32.mxu0 0.0
        %672 = vmatmul.mubr.f32.gmra.mrb[0].mxu0 %v394
        %v673 = vpop.f32.mrb[0].mxu0
        %v674 = vadd.f32 0.0, %v673
        %v675 = vpop.f32.mrb[0].mxu0
        %676 = vmatprep.mubr.f32.mxu0 0.0
        %677 = vmatmul.mubr.f32.gmra.mrb[0].mxu0 %v397
        %v678 = vpop.f32.mrb[0].mxu0
        %v679 = vadd.f32 0.0, %v678
        %v680 = vpop.f32.mrb[0].mxu0
        %681 = vmatprep.mubr.f32.mxu0 0.0
        %682 = vmatmul.mubr.f32.gmra.mrb[0].mxu0 %v400
        %v683 = vpop.f32.mrb[0].mxu0
        %v684 = vadd.f32 0.0, %v683
        %v685 = vpop.f32.mrb[0].mxu0
        %686 = vmatprep.mubr.f32.mxu0 0.0
        %687 = vmatmul.mubr.f32.gmra.mrb[0].mxu0 %v403
        %v688 = vpop.f32.mrb[0].mxu0
        %v689 = vadd.f32 0.0, %v688
        %v690 = vpop.f32.mrb[0].mxu0
        %691 = vmatprep.mubr.f32.mxu0 0.0
        %692 = vmatmul.mubr.f32.gmra.mrb[0].mxu0 %v406
        %v693 = vpop.f32.mrb[0].mxu0
        %v694 = vadd.f32 0.0, %v693
        %v695 = vpop.f32.mrb[0].mxu0
        %696 = vmatprep.mubr.f32.mxu0 0.0
        %697 = vmatmul.mubr.f32.gmra.mrb[0].mxu0 %v409
        %v698 = vpop.f32.mrb[0].mxu0
        %v699 = vadd.f32 0.0, %v698
        %v700 = vpop.f32.mrb[0].mxu0
        %701 = vdwg.mxu0
        %s702 = scalar_lea.vmem %s3, 16
        %v703 = vld [vmem:[%s702] sm:$0xff]
        %704 = vmatprep.subr.mxu0 0.0
        %705 = vmatpush1.msra.mxu0 %v703
        %706 = vmatprep.subr.mxu0 0.0
        %707 = vmatpush1.msra.mxu0 0.0
        %708 = vmatprep.subr.mxu0 0.0
        %709 = vmatpush1.msra.mxu0 0.0
        %710 = vmatprep.subr.mxu0 0.0
        %711 = vmatpush1.msra.mxu0 0.0
        %712 = vmatprep.subr.mxu0 0.0
        %713 = vmatpush1.msra.mxu0 0.0
        %714 = vmatprep.subr.mxu0 0.0
        %715 = vmatpush1.msra.mxu0 0.0
        %716 = vmatprep.subr.mxu0 0.0
        %717 = vmatpush1.msra.mxu0 0.0
        %718 = vmatprep.subr.mxu0 0.0
        %719 = vmatpush1.msra.mxu0 0.0
        %720 = vmatprep.subr.mxu0 0.0
        %721 = vmatpush1.msra.mxu0 0.0
        %722 = vmatprep.subr.mxu0 0.0
        %723 = vmatpush1.msra.mxu0 0.0
        %724 = vmatprep.subr.mxu0 0.0
        %725 = vmatpush1.msra.mxu0 0.0
        %726 = vmatprep.subr.mxu0 0.0
        %727 = vmatpush1.msra.mxu0 0.0
        %728 = vmatprep.subr.mxu0 0.0
        %729 = vmatpush1.msra.mxu0 0.0
        %730 = vmatprep.subr.mxu0 0.0
        %731 = vmatpush1.msra.mxu0 0.0
        %732 = vmatprep.subr.mxu0 0.0
        %733 = vmatpush1.msra.mxu0 0.0
        %734 = vmatprep.subr.mxu0 0.0
        %735 = vmatpush1.msra.mxu0 0.0
        %736 = vmatprep.subr.mxu0 0.0
        %737 = vmatpush1.msra.mxu0 0.0
        %738 = vmatprep.subr.mxu0 0.0
        %739 = vmatpush1.msra.mxu0 0.0
        %740 = vmatprep.subr.mxu0 0.0
        %741 = vmatpush1.msra.mxu0 0.0
        %742 = vmatprep.subr.mxu0 0.0
        %743 = vmatpush1.msra.mxu0 0.0
        %744 = vmatprep.subr.mxu0 0.0
        %745 = vmatpush1.msra.mxu0 0.0
        %746 = vmatprep.subr.mxu0 0.0
        %747 = vmatpush1.msra.mxu0 0.0
        %748 = vmatprep.subr.mxu0 0.0
        %749 = vmatpush1.msra.mxu0 0.0
        %750 = vmatprep.subr.mxu0 0.0
        %751 = vmatpush1.msra.mxu0 0.0
        %752 = vmatprep.subr.mxu0 0.0
        %753 = vmatpush1.msra.mxu0 0.0
        %754 = vmatprep.subr.mxu0 0.0
        %755 = vmatpush1.msra.mxu0 0.0
        %756 = vmatprep.subr.mxu0 0.0
        %757 = vmatpush1.msra.mxu0 0.0
        %758 = vmatprep.subr.mxu0 0.0
        %759 = vmatpush1.msra.mxu0 0.0
        %760 = vmatprep.subr.mxu0 0.0
        %761 = vmatpush1.msra.mxu0 0.0
        %762 = vmatprep.subr.mxu0 0.0
        %763 = vmatpush1.msra.mxu0 0.0
        %764 = vmatprep.subr.mxu0 0.0
        %765 = vmatpush1.msra.mxu0 0.0
        %766 = vmatprep.subr.mxu0 0.0
        %767 = vmatpush1.msra.mxu0 0.0
        %768 = vmatprep.mubr.f32.mxu0 0.0
        %769 = vmatmul.mubr.f32.gmra.mrb[0].mxu0 %v364
        %v770 = vpop.f32.mrb[0].mxu0
        %v771 = vpop.f32.mrb[0].mxu0
        %772 = vmatprep.mubr.f32.mxu0 0.0
        %773 = vmatmul.mubr.f32.gmra.mrb[0].mxu0 %v367
        %v774 = vpop.f32.mrb[0].mxu0
        %v775 = vadd.f32 0.0, %v774
        %v776 = vpop.f32.mrb[0].mxu0
        %777 = vmatprep.mubr.f32.mxu0 0.0
        %778 = vmatmul.mubr.f32.gmra.mrb[0].mxu0 %v370
        %v779 = vpop.f32.mrb[0].mxu0
        %v780 = vadd.f32 0.0, %v779
        %v781 = vpop.f32.mrb[0].mxu0
        %782 = vmatprep.mubr.f32.mxu0 0.0
        %783 = vmatmul.mubr.f32.gmra.mrb[0].mxu0 %v373
        %v784 = vpop.f32.mrb[0].mxu0
        %v785 = vadd.f32 0.0, %v784
        %v786 = vpop.f32.mrb[0].mxu0
        %787 = vmatprep.mubr.f32.mxu0 0.0
        %788 = vmatmul.mubr.f32.gmra.mrb[0].mxu0 %v376
        %v789 = vpop.f32.mrb[0].mxu0
        %v790 = vadd.f32 0.0, %v789
        %v791 = vpop.f32.mrb[0].mxu0
        %792 = vmatprep.mubr.f32.mxu0 0.0
        %793 = vmatmul.mubr.f32.gmra.mrb[0].mxu0 %v379
        %v794 = vpop.f32.mrb[0].mxu0
        %v795 = vadd.f32 0.0, %v794
        %v796 = vpop.f32.mrb[0].mxu0
        %797 = vmatprep.mubr.f32.mxu0 0.0
        %798 = vmatmul.mubr.f32.gmra.mrb[0].mxu0 %v382
        %v799 = vpop.f32.mrb[0].mxu0
        %v800 = vadd.f32 0.0, %v799
        %v801 = vpop.f32.mrb[0].mxu0
        %802 = vmatprep.mubr.f32.mxu0 0.0
        %803 = vmatmul.mubr.f32.gmra.mrb[0].mxu0 %v385
        %v804 = vpop.f32.mrb[0].mxu0
        %v805 = vadd.f32 0.0, %v804
        %v806 = vpop.f32.mrb[0].mxu0
        %807 = vmatprep.mubr.f32.mxu0 0.0
        %808 = vmatmul.mubr.f32.gmra.mrb[0].mxu0 %v388
        %v809 = vpop.f32.mrb[0].mxu0
        %v810 = vadd.f32 0.0, %v809
        %v811 = vpop.f32.mrb[0].mxu0
        %812 = vmatprep.mubr.f32.mxu0 0.0
        %813 = vmatmul.mubr.f32.gmra.mrb[0].mxu0 %v391
        %v814 = vpop.f32.mrb[0].mxu0
        %v815 = vadd.f32 0.0, %v814
        %v816 = vpop.f32.mrb[0].mxu0
        %817 = vmatprep.mubr.f32.mxu0 0.0
        %818 = vmatmul.mubr.f32.gmra.mrb[0].mxu0 %v394
        %v819 = vpop.f32.mrb[0].mxu0
        %v820 = vadd.f32 0.0, %v819
        %v821 = vpop.f32.mrb[0].mxu0
        %822 = vmatprep.mubr.f32.mxu0 0.0
        %823 = vmatmul.mubr.f32.gmra.mrb[0].mxu0 %v397
        %v824 = vpop.f32.mrb[0].mxu0
        %v825 = vadd.f32 0.0, %v824
        %v826 = vpop.f32.mrb[0].mxu0
        %827 = vmatprep.mubr.f32.mxu0 0.0
        %828 = vmatmul.mubr.f32.gmra.mrb[0].mxu0 %v400
        %v829 = vpop.f32.mrb[0].mxu0
        %v830 = vadd.f32 0.0, %v829
        %v831 = vpop.f32.mrb[0].mxu0
        %832 = vmatprep.mubr.f32.mxu0 0.0
        %833 = vmatmul.mubr.f32.gmra.mrb[0].mxu0 %v403
        %v834 = vpop.f32.mrb[0].mxu0
        %v835 = vadd.f32 0.0, %v834
        %v836 = vpop.f32.mrb[0].mxu0
        %837 = vmatprep.mubr.f32.mxu0 0.0
        %838 = vmatmul.mubr.f32.gmra.mrb[0].mxu0 %v406
        %v839 = vpop.f32.mrb[0].mxu0
        %v840 = vadd.f32 0.0, %v839
        %v841 = vpop.f32.mrb[0].mxu0
        %842 = vmatprep.mubr.f32.mxu0 0.0
        %843 = vmatmul.mubr.f32.gmra.mrb[0].mxu0 %v409
        %v844 = vpop.f32.mrb[0].mxu0
        %v845 = vadd.f32 0.0, %v844
        %v846 = vpop.f32.mrb[0].mxu0
        %847 = vdwg.mxu0
        %v848 = vld [vmem:[%s323] sm:$0xff]
        %v850 = vsel %vm362, %v848, 0
        %852 = vmatprep.subr.mxu0 0.0
        %853 = vmatpush1.msra.mxu0 %v361
        %854 = vmatprep.subr.mxu0 0.0
        %855 = vmatpush1.msra.mxu0 0.0
        %856 = vmatprep.subr.mxu0 0.0
        %857 = vmatpush1.msra.mxu0 0.0
        %858 = vmatprep.subr.mxu0 0.0
        %859 = vmatpush1.msra.mxu0 0.0
        %860 = vmatprep.subr.mxu0 0.0
        %861 = vmatpush1.msra.mxu0 0.0
        %862 = vmatprep.subr.mxu0 0.0
        %863 = vmatpush1.msra.mxu0 0.0
        %864 = vmatprep.subr.mxu0 0.0
        %865 = vmatpush1.msra.mxu0 0.0
        %866 = vmatprep.subr.mxu0 0.0
        %867 = vmatpush1.msra.mxu0 0.0
        %868 = vmatprep.subr.mxu0 0.0
        %869 = vmatpush1.msra.mxu0 0.0
        %870 = vmatprep.subr.mxu0 0.0
        %871 = vmatpush1.msra.mxu0 0.0
        %872 = vmatprep.subr.mxu0 0.0
        %873 = vmatpush1.msra.mxu0 0.0
        %874 = vmatprep.subr.mxu0 0.0
        %875 = vmatpush1.msra.mxu0 0.0
        %876 = vmatprep.subr.mxu0 0.0
        %877 = vmatpush1.msra.mxu0 0.0
        %878 = vmatprep.subr.mxu0 0.0
        %879 = vmatpush1.msra.mxu0 0.0
        %880 = vmatprep.subr.mxu0 0.0
        %881 = vmatpush1.msra.mxu0 0.0
        %882 = vmatprep.subr.mxu0 0.0
        %883 = vmatpush1.msra.mxu0 0.0
        %884 = vmatprep.subr.mxu0 0.0
        %885 = vmatpush1.msra.mxu0 0.0
        %886 = vmatprep.subr.mxu0 0.0
        %887 = vmatpush1.msra.mxu0 0.0
        %888 = vmatprep.subr.mxu0 0.0
        %889 = vmatpush1.msra.mxu0 0.0
        %890 = vmatprep.subr.mxu0 0.0
        %891 = vmatpush1.msra.mxu0 0.0
        %892 = vmatprep.subr.mxu0 0.0
        %893 = vmatpush1.msra.mxu0 0.0
        %894 = vmatprep.subr.mxu0 0.0
        %895 = vmatpush1.msra.mxu0 0.0
        %896 = vmatprep.subr.mxu0 0.0
        %897 = vmatpush1.msra.mxu0 0.0
        %898 = vmatprep.subr.mxu0 0.0
        %899 = vmatpush1.msra.mxu0 0.0
        %900 = vmatprep.subr.mxu0 0.0
        %901 = vmatpush1.msra.mxu0 0.0
        %902 = vmatprep.subr.mxu0 0.0
        %903 = vmatpush1.msra.mxu0 0.0
        %904 = vmatprep.subr.mxu0 0.0
        %905 = vmatpush1.msra.mxu0 0.0
        %906 = vmatprep.subr.mxu0 0.0
        %907 = vmatpush1.msra.mxu0 0.0
        %908 = vmatprep.subr.mxu0 0.0
        %909 = vmatpush1.msra.mxu0 0.0
        %910 = vmatprep.subr.mxu0 0.0
        %911 = vmatpush1.msra.mxu0 0.0
        %912 = vmatprep.subr.mxu0 0.0
        %913 = vmatpush1.msra.mxu0 0.0
        %914 = vmatprep.subr.mxu0 0.0
        %915 = vmatpush1.msra.mxu0 0.0
        %916 = vmatprep.mubr.f32.mxu0 0.0
        %917 = vmatmul.mubr.f32.gmra.mrb[0].mxu0 %v850
        %v918 = vpop.f32.mrb[0].mxu0
        %v919 = vadd.f32 0.0, %v918
        %v920 = vpop.f32.mrb[0].mxu0
        %921 = vdwg.mxu0
        %v922 = vld [vmem:[%s339] sm:$0xff]
        %v924 = vsel %vm362, %v922, 0
        %926 = vmatprep.subr.mxu0 0.0
        %927 = vmatpush1.msra.mxu0 %v703
        %928 = vmatprep.subr.mxu0 0.0
        %929 = vmatpush1.msra.mxu0 0.0
        %930 = vmatprep.subr.mxu0 0.0
        %931 = vmatpush1.msra.mxu0 0.0
        %932 = vmatprep.subr.mxu0 0.0
        %933 = vmatpush1.msra.mxu0 0.0
        %934 = vmatprep.subr.mxu0 0.0
        %935 = vmatpush1.msra.mxu0 0.0
        %936 = vmatprep.subr.mxu0 0.0
        %937 = vmatpush1.msra.mxu0 0.0
        %938 = vmatprep.subr.mxu0 0.0
        %939 = vmatpush1.msra.mxu0 0.0
        %940 = vmatprep.subr.mxu0 0.0
        %941 = vmatpush1.msra.mxu0 0.0
        %942 = vmatprep.subr.mxu0 0.0
        %943 = vmatpush1.msra.mxu0 0.0
        %944 = vmatprep.subr.mxu0 0.0
        %945 = vmatpush1.msra.mxu0 0.0
        %946 = vmatprep.subr.mxu0 0.0
        %947 = vmatpush1.msra.mxu0 0.0
        %948 = vmatprep.subr.mxu0 0.0
        %949 = vmatpush1.msra.mxu0 0.0
        %950 = vmatprep.subr.mxu0 0.0
        %951 = vmatpush1.msra.mxu0 0.0
        %952 = vmatprep.subr.mxu0 0.0
        %953 = vmatpush1.msra.mxu0 0.0
        %954 = vmatprep.subr.mxu0 0.0
        %955 = vmatpush1.msra.mxu0 0.0
        %956 = vmatprep.subr.mxu0 0.0
        %957 = vmatpush1.msra.mxu0 0.0
        %958 = vmatprep.subr.mxu0 0.0
        %959 = vmatpush1.msra.mxu0 0.0
        %960 = vmatprep.subr.mxu0 0.0
        %961 = vmatpush1.msra.mxu0 0.0
        %962 = vmatprep.subr.mxu0 0.0
        %963 = vmatpush1.msra.mxu0 0.0
        %964 = vmatprep.subr.mxu0 0.0
        %965 = vmatpush1.msra.mxu0 0.0
        %966 = vmatprep.subr.mxu0 0.0
        %967 = vmatpush1.msra.mxu0 0.0
        %968 = vmatprep.subr.mxu0 0.0
        %969 = vmatpush1.msra.mxu0 0.0
        %970 = vmatprep.subr.mxu0 0.0
        %971 = vmatpush1.msra.mxu0 0.0
        %972 = vmatprep.subr.mxu0 0.0
        %973 = vmatpush1.msra.mxu0 0.0
        %974 = vmatprep.subr.mxu0 0.0
        %975 = vmatpush1.msra.mxu0 0.0
        %976 = vmatprep.subr.mxu0 0.0
        %977 = vmatpush1.msra.mxu0 0.0
        %978 = vmatprep.subr.mxu0 0.0
        %979 = vmatpush1.msra.mxu0 0.0
        %980 = vmatprep.subr.mxu0 0.0
        %981 = vmatpush1.msra.mxu0 0.0
        %982 = vmatprep.subr.mxu0 0.0
        %983 = vmatpush1.msra.mxu0 0.0
        %984 = vmatprep.subr.mxu0 0.0
        %985 = vmatpush1.msra.mxu0 0.0
        %986 = vmatprep.subr.mxu0 0.0
        %987 = vmatpush1.msra.mxu0 0.0
        %988 = vmatprep.subr.mxu0 0.0
        %989 = vmatpush1.msra.mxu0 0.0
        %990 = vmatprep.mubr.f32.mxu0 0.0
        %991 = vmatmul.mubr.f32.gmra.mrb[0].mxu0 %v924
        %v992 = vpop.f32.mrb[0].mxu0
        %v993 = vadd.f32 0.0, %v992
        %v994 = vpop.f32.mrb[0].mxu0
        %995 = vdwg.mxu0
        %p996 = scmp.gt.s32.totalorder %s23, 0
        %s997 = scalar_select %p996, 1, 0
        %s998 = scvt.s32.f32 %s997
        %v999 = vstv %s998
        %v1000 = vmul.f32 %v919, %v999
        %p1001 = scmp.lt.s32.totalorder %s23, 0
        %s1002 = scalar_select %p1001, 1, 0
        %s1003 = scvt.s32.f32 %s1002
        %v1004 = vstv %s1003
        %v1005 = vmul.f32 %v993, %v1004
        %v1006 = vadd.f32 %v624, %v1000
        %v1007 = vadd.f32 %v629, %v478
        %v1008 = vadd.f32 %v634, %v483
        %v1009 = vadd.f32 %v639, %v488
        %v1010 = vadd.f32 %v644, %v493
        %v1011 = vadd.f32 %v649, %v498
        %v1012 = vadd.f32 %v654, %v503
        %v1013 = vadd.f32 %v659, %v508
        %v1014 = vadd.f32 %v664, %v513
        %v1015 = vadd.f32 %v669, %v518
        %v1016 = vadd.f32 %v674, %v523
        %v1017 = vadd.f32 %v679, %v528
        %v1018 = vadd.f32 %v684, %v533
        %v1019 = vadd.f32 %v689, %v538
        %v1020 = vadd.f32 %v694, %v543
        %v1021 = vadd.f32 %v699, %v548
        %v1022 = vadd.f32 %v1006, %v775
        %v1023 = vadd.f32 %v1007, %v780
        %v1024 = vadd.f32 %v1008, %v785
        %v1025 = vadd.f32 %v1009, %v790
        %v1026 = vadd.f32 %v1010, %v795
        %v1027 = vadd.f32 %v1011, %v800
        %v1028 = vadd.f32 %v1012, %v805
        %v1029 = vadd.f32 %v1013, %v810
        %v1030 = vadd.f32 %v1014, %v815
        %v1031 = vadd.f32 %v1015, %v820
        %v1032 = vadd.f32 %v1016, %v825
        %v1033 = vadd.f32 %v1017, %v830
        %v1034 = vadd.f32 %v1018, %v835
        %v1035 = vadd.f32 %v1019, %v840
        %v1036 = vadd.f32 %v1020, %v845
        %v1037 = vadd.f32 %v1021, %v1005
        %v1054 = vrot.slane %v1022, 7
        %v1055 = vrot.slane %v1023, 7
        %v1056 = vrot.slane %v1024, 7
        %v1057 = vrot.slane %v1025, 7
        %v1058 = vrot.slane %v1026, 7
        %v1059 = vrot.slane %v1027, 7
        %v1060 = vrot.slane %v1028, 7
        %v1061 = vrot.slane %v1029, 7
        %v1062 = vrot.slane %v1030, 7
        %v1063 = vrot.slane %v1031, 7
        %v1064 = vrot.slane %v1032, 7
        %v1065 = vrot.slane %v1033, 7
        %v1066 = vrot.slane %v1034, 7
        %v1067 = vrot.slane %v1035, 7
        %v1068 = vrot.slane %v1036, 7
        %v1069 = vrot.slane %v1037, 7
        %1070 = vrot.lane.b32.xlu0 %v1054, 124
        %v1071 = vpop.permute.xlu0 %1070
        %1072 = vrot.lane.b32.xlu0 %v1055, 124
        %v1073 = vpop.permute.xlu0 %1072
        %1074 = vrot.lane.b32.xlu0 %v1056, 124
        %v1075 = vpop.permute.xlu0 %1074
        %1076 = vrot.lane.b32.xlu0 %v1057, 124
        %v1077 = vpop.permute.xlu0 %1076
        %1078 = vrot.lane.b32.xlu0 %v1058, 124
        %v1079 = vpop.permute.xlu0 %1078
        %1080 = vrot.lane.b32.xlu0 %v1059, 124
        %v1081 = vpop.permute.xlu0 %1080
        %1082 = vrot.lane.b32.xlu0 %v1060, 124
        %v1083 = vpop.permute.xlu0 %1082
        %1084 = vrot.lane.b32.xlu0 %v1061, 124
        %v1085 = vpop.permute.xlu0 %1084
        %1086 = vrot.lane.b32.xlu0 %v1062, 124
        %v1087 = vpop.permute.xlu0 %1086
        %1088 = vrot.lane.b32.xlu0 %v1063, 124
        %v1089 = vpop.permute.xlu0 %1088
        %1090 = vrot.lane.b32.xlu0 %v1064, 124
        %v1091 = vpop.permute.xlu0 %1090
        %1092 = vrot.lane.b32.xlu0 %v1065, 124
        %v1093 = vpop.permute.xlu0 %1092
        %1094 = vrot.lane.b32.xlu0 %v1066, 124
        %v1095 = vpop.permute.xlu0 %1094
        %1096 = vrot.lane.b32.xlu0 %v1067, 124
        %v1097 = vpop.permute.xlu0 %1096
        %1098 = vrot.lane.b32.xlu0 %v1068, 124
        %v1099 = vpop.permute.xlu0 %1098
        %1100 = vrot.lane.b32.xlu0 %v1069, 124
        %v1101 = vpop.permute.xlu0 %1100
        %vm1118 = vcmask 1040384
        %v1119 = vsel %vm1118, 0.0, %v1071
        %v1120 = vsel %vm1118, 0.0, %v1073
        %v1121 = vsel %vm1118, 0.0, %v1075
        %v1122 = vsel %vm1118, 0.0, %v1077
        %v1123 = vsel %vm1118, 0.0, %v1079
        %v1124 = vsel %vm1118, 0.0, %v1081
        %v1125 = vsel %vm1118, 0.0, %v1083
        %v1126 = vsel %vm1118, 0.0, %v1085
        %v1127 = vsel %vm1118, 0.0, %v1087
        %v1128 = vsel %vm1118, 0.0, %v1089
        %v1129 = vsel %vm1118, 0.0, %v1091
        %v1130 = vsel %vm1118, 0.0, %v1093
        %v1131 = vsel %vm1118, 0.0, %v1095
        %v1132 = vsel %vm1118, 0.0, %v1097
        %v1133 = vsel %vm1118, 0.0, %v1099
        %v1134 = vsel %vm1118, 0.0, %v1101
        %v1135 = vrot.slane %v1022, 1
        %v1136 = vrot.slane %v1023, 1
        %v1137 = vrot.slane %v1024, 1
        %v1138 = vrot.slane %v1025, 1
        %v1139 = vrot.slane %v1026, 1
        %v1140 = vrot.slane %v1027, 1
        %v1141 = vrot.slane %v1028, 1
        %v1142 = vrot.slane %v1029, 1
        %v1143 = vrot.slane %v1030, 1
        %v1144 = vrot.slane %v1031, 1
        %v1145 = vrot.slane %v1032, 1
        %v1146 = vrot.slane %v1033, 1
        %v1147 = vrot.slane %v1034, 1
        %v1148 = vrot.slane %v1035, 1
        %v1149 = vrot.slane %v1036, 1
        %v1150 = vrot.slane %v1037, 1
        %vm1167 = vcmask 1046528
        %v1168 = vsel %vm1167, %v1135, 0.0
        %v1169 = vsel %vm1167, %v1136, 0.0
        %v1170 = vsel %vm1167, %v1137, 0.0
        %v1171 = vsel %vm1167, %v1138, 0.0
        %v1172 = vsel %vm1167, %v1139, 0.0
        %v1173 = vsel %vm1167, %v1140, 0.0
        %v1174 = vsel %vm1167, %v1141, 0.0
        %v1175 = vsel %vm1167, %v1142, 0.0
        %v1176 = vsel %vm1167, %v1143, 0.0
        %v1177 = vsel %vm1167, %v1144, 0.0
        %v1178 = vsel %vm1167, %v1145, 0.0
        %v1179 = vsel %vm1167, %v1146, 0.0
        %v1180 = vsel %vm1167, %v1147, 0.0
        %v1181 = vsel %vm1167, %v1148, 0.0
        %v1182 = vsel %vm1167, %v1149, 0.0
        %v1183 = vsel %vm1167, %v1150, 0.0
        %1200 = vrot.lane.b32.xlu0 %v1168, 124
        %v1201 = vpop.permute.xlu0 %1200
        %1202 = vrot.lane.b32.xlu0 %v1169, 124
        %v1203 = vpop.permute.xlu0 %1202
        %1204 = vrot.lane.b32.xlu0 %v1170, 124
        %v1205 = vpop.permute.xlu0 %1204
        %1206 = vrot.lane.b32.xlu0 %v1171, 124
        %v1207 = vpop.permute.xlu0 %1206
        %1208 = vrot.lane.b32.xlu0 %v1172, 124
        %v1209 = vpop.permute.xlu0 %1208
        %1210 = vrot.lane.b32.xlu0 %v1173, 124
        %v1211 = vpop.permute.xlu0 %1210
        %1212 = vrot.lane.b32.xlu0 %v1174, 124
        %v1213 = vpop.permute.xlu0 %1212
        %1214 = vrot.lane.b32.xlu0 %v1175, 124
        %v1215 = vpop.permute.xlu0 %1214
        %1216 = vrot.lane.b32.xlu0 %v1176, 124
        %v1217 = vpop.permute.xlu0 %1216
        %1218 = vrot.lane.b32.xlu0 %v1177, 124
        %v1219 = vpop.permute.xlu0 %1218
        %1220 = vrot.lane.b32.xlu0 %v1178, 124
        %v1221 = vpop.permute.xlu0 %1220
        %1222 = vrot.lane.b32.xlu0 %v1179, 124
        %v1223 = vpop.permute.xlu0 %1222
        %1224 = vrot.lane.b32.xlu0 %v1180, 124
        %v1225 = vpop.permute.xlu0 %1224
        %1226 = vrot.lane.b32.xlu0 %v1181, 124
        %v1227 = vpop.permute.xlu0 %1226
        %1228 = vrot.lane.b32.xlu0 %v1182, 124
        %v1229 = vpop.permute.xlu0 %1228
        %1230 = vrot.lane.b32.xlu0 %v1183, 124
        %v1231 = vpop.permute.xlu0 %1230
        %vm1248 = vcmask 15360
        %v1249 = vsel %vm1248, %v1119, %v1201
        %v1250 = vsel %vm1248, %v1120, %v1203
        %v1251 = vsel %vm1248, %v1121, %v1205
        %v1252 = vsel %vm1248, %v1122, %v1207
        %v1253 = vsel %vm1248, %v1123, %v1209
        %v1254 = vsel %vm1248, %v1124, %v1211
        %v1255 = vsel %vm1248, %v1125, %v1213
        %v1256 = vsel %vm1248, %v1126, %v1215
        %v1257 = vsel %vm1248, %v1127, %v1217
        %v1258 = vsel %vm1248, %v1128, %v1219
        %v1259 = vsel %vm1248, %v1129, %v1221
        %v1260 = vsel %vm1248, %v1130, %v1223
        %v1261 = vsel %vm1248, %v1131, %v1225
        %v1262 = vsel %vm1248, %v1132, %v1227
        %v1263 = vsel %vm1248, %v1133, %v1229
        %v1264 = vsel %vm1248, %v1134, %v1231
        %v1265 = vadd.f32 %v1022, %v1249
        %v1266 = vadd.f32 %v1023, %v1250
        %v1267 = vadd.f32 %v1024, %v1251
        %v1268 = vadd.f32 %v1025, %v1252
        %v1269 = vadd.f32 %v1026, %v1253
        %v1270 = vadd.f32 %v1027, %v1254
        %v1271 = vadd.f32 %v1028, %v1255
        %v1272 = vadd.f32 %v1029, %v1256
        %v1273 = vadd.f32 %v1030, %v1257
        %v1274 = vadd.f32 %v1031, %v1258
        %v1275 = vadd.f32 %v1032, %v1259
        %v1276 = vadd.f32 %v1033, %v1260
        %v1277 = vadd.f32 %v1034, %v1261
        %v1278 = vadd.f32 %v1035, %v1262
        %v1279 = vadd.f32 %v1036, %v1263
        %v1280 = vadd.f32 %v1037, %v1264
        %1289 = vrot.lane.b32.xlu0 %v1266, 4
        %v1290 = vpop.permute.xlu0 %1289
        %1291 = vrot.lane.b32.xlu0 %v1268, 4
        %v1292 = vpop.permute.xlu0 %1291
        %1293 = vrot.lane.b32.xlu0 %v1270, 4
        %v1294 = vpop.permute.xlu0 %1293
        %1295 = vrot.lane.b32.xlu0 %v1272, 4
        %v1296 = vpop.permute.xlu0 %1295
        %1297 = vrot.lane.b32.xlu0 %v1274, 4
        %v1298 = vpop.permute.xlu0 %1297
        %1299 = vrot.lane.b32.xlu0 %v1276, 4
        %v1300 = vpop.permute.xlu0 %1299
        %1301 = vrot.lane.b32.xlu0 %v1278, 4
        %v1302 = vpop.permute.xlu0 %1301
        %1303 = vrot.lane.b32.xlu0 %v1280, 4
        %v1304 = vpop.permute.xlu0 %1303
        %vm1313 = vcmask 31744
        %v1314 = vsel %vm1313, %v1265, %v1290
        %v1315 = vsel %vm1313, %v1267, %v1292
        %v1316 = vsel %vm1313, %v1269, %v1294
        %v1317 = vsel %vm1313, %v1271, %v1296
        %v1318 = vsel %vm1313, %v1273, %v1298
        %v1319 = vsel %vm1313, %v1275, %v1300
        %v1320 = vsel %vm1313, %v1277, %v1302
        %v1321 = vsel %vm1313, %v1279, %v1304
        %1322 = vst.msk [vmem:[%s301] sm:$0xff] %vm362, %v1314
        %1323 = vst.msk [vmem:[%s301 + $0x8] sm:$0xff] %vm362, %v1315
        %1324 = vst.msk [vmem:[%s301 + $0x10] sm:$0xff] %vm362, %v1316
        %1325 = vst.msk [vmem:[%s301 + $0x18] sm:$0xff] %vm362, %v1317
        %1326 = vst.msk [vmem:[%s301 + $0x20] sm:$0xff] %vm362, %v1318
        %1327 = vst.msk [vmem:[%s301 + $0x28] sm:$0xff] %vm362, %v1319
        %1328 = vst.msk [vmem:[%s301 + $0x30] sm:$0xff] %vm362, %v1320
        %1329 = vst.msk [vmem:[%s301 + $0x38] sm:$0xff] %vm362, %v1321
        %s1330 = sand.u32 %s161, 1
        %s1331 = scalar_lea.sflag [#allocation3], %s1330
        %s1332 = sand.u32 %s161, 1
        %s1333 = smul.addr %s1332, 64
        %s1334 = scalar_lea.vmem [#allocation2], %s1333
        // Predicated region
        $region37: #{tpu_custom_call.1} parent=35 // pred_check
          %p1335 = pneg %p171
        $region38: #{tpu_custom_call.1} parent=35 // pred_check_branch
          %1337 = sbr.rel (%p1335) target = $region40
        $region39: #{tpu_custom_call.1} parent=35 // pred_region
          %s1338 = smul.u32 8, %s23
          %s1340 = ssub.s32 1024, 1024
          %1341 = vsyncadd %s1331, %s1340
          %s1342 = smul.addr %s22, 8
          %s1343 = sadd.s32 %s1338, %s1342
          %s1344 = smul.addr %s1343, 128
          %s1345 = scalar_lea.hbm %s4, %s1344
          %s1346 = sshll.u32 %s1334, 4
          %s1347 = int_to_ptr.vmem [resolvable:$true] %s1346
          %1352 = dma.vmem_to_hbm [thread:$0]  %s1347, 1024, %s1345, %s1331, 128, 128, 8
        $region40: #{tpu_custom_call.1} parent=35 // pred_fallthru
          _
      $region36: #{tpu_custom_call.1} parent=5 // pred_fallthru
        _
      %p1353 = scmp.le.s32.totalorder 2, %s13
      // Predicated region
      $region41: #{tpu_custom_call.1} parent=5 // pred_check
        %p1354 = pneg %p1353
      $region42: #{tpu_custom_call.1} parent=5 // pred_check_branch
        %1356 = sbr.rel (%p1354) target = $region44
      $region43: #{tpu_custom_call.1} parent=5 // pred_region
        %s1357 = ssub.s32 %s13, 2
        // Predicated region
        $region45: #{tpu_custom_call.1} parent=43 // pred_check
          %p1358 = pneg %p177
        $region46: #{tpu_custom_call.1} parent=43 // pred_check_branch
          %1360 = sbr.rel (%p1358) target = $region48
        $region47: #{tpu_custom_call.1} parent=43 // pred_region
          %s1361 = sand.u32 %s162, 1
          %s1362 = scalar_lea.sflag [#allocation3], %s1361
          %s1363 = sand.u32 %s162, 1
          %s1364 = smul.addr %s1363, 64
          %s1365 = scalar_lea.vmem [#allocation2], %s1364
          %1366 = dma.done %s1362, 1024
        $region48: #{tpu_custom_call.1} parent=43 // pred_fallthru
          _
      $region44: #{tpu_custom_call.1} parent=5 // pred_fallthru
        _
    $region6: #{tpu_custom_call.1} parent=1 // loop_footer
      %s17 = sadd.s32 1, %s13
    $region7: #{tpu_custom_call.1} parent=1 // loop_footer_branch
      %12 = sbr.rel target = $region3
    $region8: #{tpu_custom_call.1} parent=1 // loop_exit
      _
    %1367 = vsyncpa [#allocation3], 1
    %s1368 = scalar_lea.sflag [#allocation3], 1
    %1369 = vsyncpa %s1368, 1

</llo_original>
